<compile_context>
chip_gen: v7x
topology: tpu7x:2x2x1
jax: 0.10.0
libtpu: 0.0.40
codegen_flags: <defaults>
</compile_context>

<pallas_src>
import functools

import jax
import jax.numpy as jnp
from jax import lax
from jax.experimental import pallas as pl
from jax.experimental.pallas import tpu as pltpu


def _conv_bn_kernel(x_ref, w_ref, bias_ref, o_ref, col_ref, *,
                    kh, kw, s_h, s_w, th, w_out, c_in, k_dim,
                    m_rows, tap_group):
    """One (batch, row-tile) grid step.

    x_ref:    (Hp, Wp, Cin)        full padded image of this batch element
    w_ref:    (Kp, Cout_p)         im2col weights (BN scale folded in); K and
                                   Cout zero-padded to multiples of 128
    bias_ref: (1, Cout_p)          folded BN bias = beta - mean * scale
    o_ref:    (TH, Wout, Cout_p)   output row tile
    col_ref:  (2, TH*Wout, Kp)     double-buffered VMEM im2col scratch
    """
    k_dim_p = col_ref.shape[-1]
    k_pad = k_dim_p - k_dim

    # Double buffer: alternate col slots across grid steps so the next step's
    # im2col stores don't WAR-hazard against this step's matmul reads.
    # (Per-core scratch: within one core's sequential steps this is correct
    #  whether or not the parity alternates.)
    step = pl.program_id(0) * pl.num_programs(1) + pl.program_id(1)
    slot = step % 2

    row_base = pl.multiple_of(pl.program_id(1) * (th * s_h), th * s_h)

    # im2col straight from the ref (strided loads, no materialized window),
    # chunked over output rows to bound transient vreg pressure, with
    # `tap_group` kw-taps packed along lanes per store.
    for ck in range(th // m_rows):
        out_r0 = ck * m_rows
        rows = m_rows * w_out
        row_lo = out_r0 * w_out
        for i in range(kh):
            r_start = row_base + out_r0 * s_h + i
            row_idx = (pl.ds(r_start, m_rows) if s_h == 1
                       else pl.ds(r_start, m_rows, stride=s_h))
            j = 0
            while j < kw:
                g = min(tap_group, kw - j)
                parts = []
                for dj in range(g):
                    col_idx = (pl.ds(j + dj, w_out) if s_w == 1
                               else pl.ds(j + dj, w_out, stride=s_w))
                    tap = x_ref[row_idx, col_idx, :]       # (m_rows, Wout, Cin)
                    parts.append(tap.reshape(rows, c_in))
                lane_lo = (i * kw + j) * c_in
                lane_hi = lane_lo + g * c_in
                if i == kh - 1 and j + g == kw and k_pad > 0:
                    # Zero-fill the K padding tail as part of this store so the
                    # zero rows of w_ref never multiply stale VMEM garbage
                    # (NaN * 0 would poison the accumulator).
                    parts.append(jnp.zeros((rows, k_pad), dtype=col_ref.dtype))
                    lane_hi = k_dim_p
                blk = parts[0] if len(parts) == 1 else jnp.concatenate(parts, axis=-1)
                col_ref[slot, row_lo:row_lo + rows, lane_lo:lane_hi] = blk
                j += g

    # Single MXU matmul over the fused, 128-aligned contraction dim; f32 accum.
    acc = jnp.dot(col_ref[slot], w_ref[...], preferred_element_type=jnp.float32)

    # BN scale is already folded into w_ref; only the bias add remains.
    y = acc + bias_ref[...]
    o_ref[...] = y.reshape(th, w_out, y.shape[-1]).astype(o_ref.dtype)
    # TODO(synk): no activation -- the PyTorch module's forward only runs
    # Conv2d + BatchNorm2d (its docstring mentions a leaky ReLU it never adds).


def _round_up(x, m):
    return ((x + m - 1) // m) * m


def _largest_divisor_leq(n, cap):
    cap = max(1, min(cap, n))
    for t in range(cap, 0, -1):
        if n % t == 0:
            return t
    return 1


def _vmem_capacity_bytes():
    try:
        return int(pltpu.get_tpu_info().vmem_capacity_bytes)
    except Exception:
        return 64 << 20          # conservative (v7x-sized) fallback


def conv2d_batch_pallas(x_nchw, weight_oihw, gamma, beta,
                        running_mean, running_var,
                        stride=1, eps=1e-5, row_tile=None, compute_dtype=None):
    """Pallas implementation of Conv2dBatch.forward (eval-mode BN).

    x_nchw:      (N, Cin, H, W)
    weight_oihw: (Cout, Cin, KH, KW)
    returns:     (N, Cout, Hout, Wout)
    """
    if isinstance(stride, (tuple, list)):
        s_h, s_w = int(stride[0]), int(stride[1])
    else:
        s_h = s_w = int(stride)

    n, c_in, h, w = x_nchw.shape
    c_out, _, kh, kw = weight_oihw.shape
    pad_h, pad_w = kh // 2, kw // 2              # matches the module's int(k/2)

    h_out = (h + 2 * pad_h - kh) // s_h + 1
    w_out = (w + 2 * pad_w - kw) // s_w + 1

    out_dtype = x_nchw.dtype
    cdt = jnp.dtype(compute_dtype) if compute_dtype is not None else jnp.dtype(out_dtype)

    # --- glue: layout + padding + BN folding in plain JAX -------------------
    # TODO(synk): accept/emit NHWC (and fold the spatial halo into the kernel)
    # to drop these extra HBM passes when the surrounding graph allows it.
    x_nhwc = jnp.transpose(x_nchw, (0, 2, 3, 1))
    x_pad = jnp.pad(x_nhwc, ((0, 0), (pad_h, pad_h), (pad_w, pad_w), (0, 0)))
    x_pad = x_pad.astype(cdt)
    hp, wp = x_pad.shape[1], x_pad.shape[2]

    k_dim = kh * kw * c_in
    k_dim_p = _round_up(k_dim, 128)              # lane-aligned contraction dim
    c_out_p = _round_up(c_out, 128)              # lane-dense output channels

    scale = (gamma.astype(jnp.float32)
             / jnp.sqrt(running_var.astype(jnp.float32) + eps))
    bias = beta.astype(jnp.float32) - running_mean.astype(jnp.float32) * scale

    # (Cout,Cin,KH,KW) -> (KH,KW,Cin,Cout) -> (K, Cout); fold BN scale into the
    # weights (exact: conv has bias=False), then zero-pad K and Cout.
    w_mat = jnp.transpose(weight_oihw, (2, 3, 1, 0)).reshape(k_dim, c_out)
    w_mat = (w_mat.astype(jnp.float32) * scale[None, :]).astype(cdt)
    w_mat = jnp.pad(w_mat, ((0, k_dim_p - k_dim), (0, c_out_p - c_out)))
    bias2d = jnp.pad(bias, (0, c_out_p - c_out)).reshape(1, c_out_p)

    in_isz = jnp.dtype(cdt).itemsize
    out_isz = jnp.dtype(out_dtype).itemsize

    def need_bytes(th):
        m = th * w_out
        x_blk = hp * wp * c_in * in_isz
        w_blk = k_dim_p * c_out_p * in_isz
        b_blk = c_out_p * 4
        o_blk = m * c_out_p * out_isz
        col_blk = 2 * m * k_dim_p * in_isz       # explicit double buffer
        acc_blk = 2 * m * c_out_p * 4            # matmul acc / epilogue spill room
        # TODO(synk): x/w/bias have constant block indices yet still get the
        # default 2 pipeline buffers; pl.Buffered(1) would reclaim one copy.
        return 2 * (x_blk + w_blk + b_blk + o_blk) + col_blk + acc_blk + (2 << 20)

    vmem_phys = _vmem_capacity_bytes()
    vmem_cap = int(vmem_phys * 0.85)             # headroom for compiler scratch
    m_target = 512 if vmem_phys <= (64 << 20) else 1024

    if row_tile is not None:
        th = int(row_tile)
        if h_out % th != 0:
            raise ValueError(f"row_tile={th} must divide h_out={h_out}")
        if need_bytes(th) > vmem_cap:
            raise ValueError(
                f"row_tile={th} needs {need_bytes(th)} B of VMEM, cap is {vmem_cap} B")
    else:
        divisors = [t for t in range(1, h_out + 1) if h_out % t == 0]
        feasible = [t for t in divisors if need_bytes(t) <= vmem_cap]
        if not feasible:
            # TODO(synk): switch the x BlockSpec to a th_in-row halo window
            # (pl.Element / manual DMA) for images too large for VMEM.
            raise ValueError(
                "Conv2dBatch pallas kernel does not fit in VMEM: a single "
                f"output row needs {need_bytes(1)} B (cap {vmem_cap} B)")
        # Prefer >= 2 total grid steps so dual-TensorCore parts get work.
        multi = [t for t in feasible if n * (h_out // t) >= 2]
        pool = multi if multi else feasible
        th = min(pool, key=lambda t: (abs(t * w_out - m_target), -t))
    n_rt = h_out // th

    need = need_bytes(th)
    vmem_limit = int(min(vmem_cap, max(need, 16 << 20)))

    # im2col chunking: pack tap_group kw-taps (<= 128 lanes) per store and
    # bound the transient concat value to roughly 32 vregs.
    tap_group = min(kw, max(1, 128 // max(c_in, 1)))
    col_rows_target = max(8, 256 // (tap_group + 1))
    m_rows = _largest_divisor_leq(th, max(1, col_rows_target // max(w_out, 1)))

    kernel = functools.partial(
        _conv_bn_kernel,
        kh=kh, kw=kw, s_h=s_h, s_w=s_w, th=th, w_out=w_out,
        c_in=c_in, k_dim=k_dim, m_rows=m_rows, tap_group=tap_group)

    out_nhwc = pl.pallas_call(
        kernel,
        out_shape=jax.ShapeDtypeStruct((n, h_out, w_out, c_out_p), out_dtype),
        grid_spec=pltpu.PrefetchScalarGridSpec(
            num_scalar_prefetch=0,
            grid=(n, n_rt),
            in_specs=[
                # Full padded image per batch element (block index constant in
                # the row-tile axis -> stays resident, no re-DMA across tiles).
                # TODO(synk): use a th_in-row halo window for very large images
                # so input VMEM does not scale with the whole image (v7x).
                pl.BlockSpec((None, hp, wp, c_in), lambda b, r: (b, 0, 0, 0)),
                pl.BlockSpec((k_dim_p, c_out_p), lambda b, r: (0, 0)),
                pl.BlockSpec((1, c_out_p), lambda b, r: (0, 0)),
            ],
            out_specs=pl.BlockSpec((None, th, w_out, c_out_p),
                                   lambda b, r: (b, r, 0, 0)),
            scratch_shapes=[pltpu.VMEM((2, th * w_out, k_dim_p), cdt)],
        ),
        compiler_params=pltpu.CompilerParams(
            dimension_semantics=("parallel", "parallel"),
            vmem_limit_bytes=vmem_limit),
    )(x_pad, w_mat, bias2d)
    # TODO(synk): add a Cout tiling grid axis (tn multiple of 256) for very
    # large Cout so the weight block + output tile stay within v7x's VMEM.

    out_nhwc = out_nhwc[..., :c_out]             # drop lane padding
    return jnp.transpose(out_nhwc, (0, 3, 1, 2)) # back to NCHW


def _reference(x_nchw, weight_oihw, gamma, beta, running_mean, running_var,
               stride=1, eps=1e-5):
    """Pure-JAX reference: conv (NCHW) + eval-mode BN."""
    if isinstance(stride, (tuple, list)):
        s_h, s_w = stride
    else:
        s_h = s_w = int(stride)
    kh, kw = weight_oihw.shape[2], weight_oihw.shape[3]
    pad = ((kh // 2, kh // 2), (kw // 2, kw // 2))
    y = lax.conv_general_dilated(
        x_nchw.astype(jnp.float32), weight_oihw.astype(jnp.float32),
        window_strides=(s_h, s_w), padding=pad,
        dimension_numbers=("NCHW", "OIHW", "NCHW"))
    scale = gamma / jnp.sqrt(running_var + eps)
    bias = beta - running_mean * scale
    return y * scale[None, :, None, None] + bias[None, :, None, None]


if __name__ == "__main__":
    # Small shapes consistent with the module: N=2, Cin=4, H=W=16, Cout=8, k=3, stride=1
    key = jax.random.PRNGKey(0)
    k_x, k_w, k_g, k_b, k_m, k_v = jax.random.split(key, 6)

    N, C_IN, H, W = 2, 4, 16, 16
    C_OUT, K, STRIDE = 8, 3, 1

    x = jax.random.normal(k_x, (N, C_IN, H, W), dtype=jnp.float32)
    weight = jax.random.normal(k_w, (C_OUT, C_IN, K, K), dtype=jnp.float32) * 0.1
    gamma = jax.random.normal(k_g, (C_OUT,), dtype=jnp.float32) * 0.1 + 1.0
    beta = jax.random.normal(k_b, (C_OUT,), dtype=jnp.float32) * 0.1
    running_mean = jax.random.normal(k_m, (C_OUT,), dtype=jnp.float32) * 0.1
    running_var = jnp.abs(jax.random.normal(k_v, (C_OUT,), dtype=jnp.float32)) * 0.1 + 1.0

    out = conv2d_batch_pallas(x, weight, gamma, beta, running_mean, running_var,
                              stride=STRIDE)
    out = jax.block_until_ready(out)

    ref = _reference(x, weight, gamma, beta, running_mean, running_var,
                     stride=STRIDE)
    ref = jax.block_until_ready(ref)

    assert out.shape == (N, C_OUT, H, W), out.shape
    assert jnp.allclose(out, ref, atol=1e-4, rtol=1e-4), \
        float(jnp.max(jnp.abs(out - ref)))

    print("KERNEL_OK")
</pallas_src>

<mosaic_0001>
module attributes {stable_mosaic.version = 11 : i64} {
  func.func @_conv_bn_kernel(%arg0: i32, %arg1: i32, %arg2: memref<1x18x18x4xf32, #tpu.memory_space<vmem>>, %arg3: memref<128x128xf32, #tpu.memory_space<vmem>>, %arg4: memref<1x128xf32, #tpu.memory_space<vmem>>, %arg5: memref<1x16x16x128xf32, #tpu.memory_space<vmem>>, %arg6: memref<2x256x128xf32, #tpu.memory_space<vmem>>) attributes {dimension_semantics = [#tpu.dimension_semantics<parallel>, #tpu.dimension_semantics<parallel>], iteration_bounds = array<i64: 2, 1>, scalar_prefetch = 0 : i64, scratch_operands = 1 : i64, tpu.core_type = #tpu.core_type<tc>, window_params = [{transform_indices = @transform_0, window_bounds = array<i64: 1, 18, 18, 4>}, {pipeline_mode = #tpu.pipeline_mode<synchronous>, transform_indices = @transform_1, window_bounds = array<i64: 128, 128>}, {pipeline_mode = #tpu.pipeline_mode<synchronous>, transform_indices = @transform_2, window_bounds = array<i64: 1, 128>}, {transform_indices = @transform_3, window_bounds = array<i64: 1, 16, 16, 128>}]} {
    %c1_i32 = arith.constant 1 : i32
    %0 = arith.muli %arg0, %c1_i32 : i32
    %1 = arith.addi %0, %arg1 : i32
    %c2_i32 = arith.constant 2 : i32
    %c0_i32 = arith.constant 0 : i32
    %2 = arith.cmpi eq, %c2_i32, %c0_i32 : i32
    %c1_i32_0 = arith.constant 1 : i32
    %3 = arith.select %2, %c1_i32_0, %c2_i32 : i32
    %4 = arith.remsi %1, %3 : i32
    %c0_i32_1 = arith.constant 0 : i32
    %5 = arith.cmpi ne, %4, %c0_i32_1 : i32
    %c0_i32_2 = arith.constant 0 : i32
    %6 = arith.cmpi slt, %4, %c0_i32_2 : i32
    %c0_i32_3 = arith.constant 0 : i32
    %7 = arith.cmpi slt, %3, %c0_i32_3 : i32
    %8 = arith.xori %6, %7 : i1
    %9 = arith.andi %8, %5 : i1
    %10 = arith.addi %4, %3 : i32
    %11 = arith.select %9, %10, %4 : i32
    %c16_i32 = arith.constant 16 : i32
    %12 = arith.muli %arg1, %c16_i32 : i32
    %13 = tpu.assume_multiple %12, 16 : i32
    %c0_i32_4 = arith.constant 0 : i32
    %14 = arith.addi %13, %c0_i32_4 : i32
    %c0_i32_5 = arith.constant 0 : i32
    %15 = arith.addi %14, %c0_i32_5 : i32
    %c0 = arith.constant 0 : index
    %16 = arith.index_cast %15 : i32 to index
    %c0_6 = arith.constant 0 : index
    %c0_7 = arith.constant 0 : index
    %17 = vector.load %arg2[%c0, %16, %c0_6, %c0_7] : memref<1x18x18x4xf32, #tpu.memory_space<vmem>>, vector<1x4x16x4xf32>
    %18 = vector.shape_cast %17 : vector<1x4x16x4xf32> to vector<4x16x4xf32>
    %19 = vector.shape_cast %18 : vector<4x16x4xf32> to vector<64x4xf32>
    %c0_8 = arith.constant 0 : index
    %20 = arith.index_cast %15 : i32 to index
    %c1 = arith.constant 1 : index
    %c0_9 = arith.constant 0 : index
    %21 = vector.load %arg2[%c0_8, %20, %c1, %c0_9] : memref<1x18x18x4xf32, #tpu.memory_space<vmem>>, vector<1x4x16x4xf32>
    %22 = vector.shape_cast %21 : vector<1x4x16x4xf32> to vector<4x16x4xf32>
    %23 = vector.shape_cast %22 : vector<4x16x4xf32> to vector<64x4xf32>
    %c0_10 = arith.constant 0 : index
    %24 = arith.index_cast %15 : i32 to index
    %c2 = arith.constant 2 : index
    %c0_11 = arith.constant 0 : index
    %25 = vector.load %arg2[%c0_10, %24, %c2, %c0_11] : memref<1x18x18x4xf32, #tpu.memory_space<vmem>>, vector<1x4x16x4xf32>
    %26 = vector.shape_cast %25 : vector<1x4x16x4xf32> to vector<4x16x4xf32>
    %27 = vector.shape_cast %26 : vector<4x16x4xf32> to vector<64x4xf32>
    %28 = tpu.concatenate %19, %23, %27 in 1 : vector<64x4xf32>, vector<64x4xf32>, vector<64x4xf32> -> vector<64x12xf32>
    %29 = arith.index_cast %11 : i32 to index
    %c0_12 = arith.constant 0 : index
    %c0_13 = arith.constant 0 : index
    %30 = vector.load %arg6[%29, %c0_12, %c0_13] : memref<2x256x128xf32, #tpu.memory_space<vmem>>, vector<1x64x12xf32>
    %31 = vector.shape_cast %30 : vector<1x64x12xf32> to vector<64x12xf32>
    %32 = vector.shape_cast %28 : vector<64x12xf32> to vector<1x64x12xf32>
    tpu.vector_store %arg6[%29, %c0_12, %c0_13], %32 {strides = array<i32>} : memref<2x256x128xf32, #tpu.memory_space<vmem>>, vector<1x64x12xf32>,
    %c0_i32_14 = arith.constant 0 : i32
    %33 = arith.addi %13, %c0_i32_14 : i32
    %c1_i32_15 = arith.constant 1 : i32
    %34 = arith.addi %33, %c1_i32_15 : i32
    %c0_16 = arith.constant 0 : index
    %35 = arith.index_cast %34 : i32 to index
    %c0_17 = arith.constant 0 : index
    %c0_18 = arith.constant 0 : index
    %36 = vector.load %arg2[%c0_16, %35, %c0_17, %c0_18] : memref<1x18x18x4xf32, #tpu.memory_space<vmem>>, vector<1x4x16x4xf32>
    %37 = vector.shape_cast %36 : vector<1x4x16x4xf32> to vector<4x16x4xf32>
    %38 = vector.shape_cast %37 : vector<4x16x4xf32> to vector<64x4xf32>
    %c0_19 = arith.constant 0 : index
    %39 = arith.index_cast %34 : i32 to index
    %c1_20 = arith.constant 1 : index
    %c0_21 = arith.constant 0 : index
    %40 = vector.load %arg2[%c0_19, %39, %c1_20, %c0_21] : memref<1x18x18x4xf32, #tpu.memory_space<vmem>>, vector<1x4x16x4xf32>
    %41 = vector.shape_cast %40 : vector<1x4x16x4xf32> to vector<4x16x4xf32>
    %42 = vector.shape_cast %41 : vector<4x16x4xf32> to vector<64x4xf32>
    %c0_22 = arith.constant 0 : index
    %43 = arith.index_cast %34 : i32 to index
    %c2_23 = arith.constant 2 : index
    %c0_24 = arith.constant 0 : index
    %44 = vector.load %arg2[%c0_22, %43, %c2_23, %c0_24] : memref<1x18x18x4xf32, #tpu.memory_space<vmem>>, vector<1x4x16x4xf32>
    %45 = vector.shape_cast %44 : vector<1x4x16x4xf32> to vector<4x16x4xf32>
    %46 = vector.shape_cast %45 : vector<4x16x4xf32> to vector<64x4xf32>
    %47 = tpu.concatenate %38, %42, %46 in 1 : vector<64x4xf32>, vector<64x4xf32>, vector<64x4xf32> -> vector<64x12xf32>
    %48 = arith.index_cast %11 : i32 to index
    %c0_25 = arith.constant 0 : index
    %c12 = arith.constant 12 : index
    %49 = vector.load %arg6[%48, %c0_25, %c12] : memref<2x256x128xf32, #tpu.memory_space<vmem>>, vector<1x64x12xf32>
    %50 = vector.shape_cast %49 : vector<1x64x12xf32> to vector<64x12xf32>
    %51 = vector.shape_cast %47 : vector<64x12xf32> to vector<1x64x12xf32>
    tpu.vector_store %arg6[%48, %c0_25, %c12], %51 {strides = array<i32>} : memref<2x256x128xf32, #tpu.memory_space<vmem>>, vector<1x64x12xf32>,
    %c0_i32_26 = arith.constant 0 : i32
    %52 = arith.addi %13, %c0_i32_26 : i32
    %c2_i32_27 = arith.constant 2 : i32
    %53 = arith.addi %52, %c2_i32_27 : i32
    %c0_28 = arith.constant 0 : index
    %54 = arith.index_cast %53 : i32 to index
    %c0_29 = arith.constant 0 : index
    %c0_30 = arith.constant 0 : index
    %55 = vector.load %arg2[%c0_28, %54, %c0_29, %c0_30] : memref<1x18x18x4xf32, #tpu.memory_space<vmem>>, vector<1x4x16x4xf32>
    %56 = vector.shape_cast %55 : vector<1x4x16x4xf32> to vector<4x16x4xf32>
    %57 = vector.shape_cast %56 : vector<4x16x4xf32> to vector<64x4xf32>
    %c0_31 = arith.constant 0 : index
    %58 = arith.index_cast %53 : i32 to index
    %c1_32 = arith.constant 1 : index
    %c0_33 = arith.constant 0 : index
    %59 = vector.load %arg2[%c0_31, %58, %c1_32, %c0_33] : memref<1x18x18x4xf32, #tpu.memory_space<vmem>>, vector<1x4x16x4xf32>
    %60 = vector.shape_cast %59 : vector<1x4x16x4xf32> to vector<4x16x4xf32>
    %61 = vector.shape_cast %60 : vector<4x16x4xf32> to vector<64x4xf32>
    %c0_34 = arith.constant 0 : index
    %62 = arith.index_cast %53 : i32 to index
    %c2_35 = arith.constant 2 : index
    %c0_36 = arith.constant 0 : index
    %63 = vector.load %arg2[%c0_34, %62, %c2_35, %c0_36] : memref<1x18x18x4xf32, #tpu.memory_space<vmem>>, vector<1x4x16x4xf32>
    %64 = vector.shape_cast %63 : vector<1x4x16x4xf32> to vector<4x16x4xf32>
    %65 = vector.shape_cast %64 : vector<4x16x4xf32> to vector<64x4xf32>
    %cst = arith.constant 0.000000e+00 : f32
    %66 = vector.broadcast %cst : f32 to vector<64x92xf32>
    %67 = tpu.concatenate %57, %61, %65, %66 in 1 : vector<64x4xf32>, vector<64x4xf32>, vector<64x4xf32>, vector<64x92xf32> -> vector<64x104xf32>
    %68 = arith.index_cast %11 : i32 to index
    %c0_37 = arith.constant 0 : index
    %c24 = arith.constant 24 : index
    %69 = vector.load %arg6[%68, %c0_37, %c24] : memref<2x256x128xf32, #tpu.memory_space<vmem>>, vector<1x64x104xf32>
    %70 = vector.shape_cast %69 : vector<1x64x104xf32> to vector<64x104xf32>
    %71 = vector.shape_cast %67 : vector<64x104xf32> to vector<1x64x104xf32>
    tpu.vector_store %arg6[%68, %c0_37, %c24], %71 {strides = array<i32>} : memref<2x256x128xf32, #tpu.memory_space<vmem>>, vector<1x64x104xf32>,
    %c4_i32 = arith.constant 4 : i32
    %72 = arith.addi %13, %c4_i32 : i32
    %c0_i32_38 = arith.constant 0 : i32
    %73 = arith.addi %72, %c0_i32_38 : i32
    %c0_39 = arith.constant 0 : index
    %74 = arith.index_cast %73 : i32 to index
    %c0_40 = arith.constant 0 : index
    %c0_41 = arith.constant 0 : index
    %75 = vector.load %arg2[%c0_39, %74, %c0_40, %c0_41] : memref<1x18x18x4xf32, #tpu.memory_space<vmem>>, vector<1x4x16x4xf32>
    %76 = vector.shape_cast %75 : vector<1x4x16x4xf32> to vector<4x16x4xf32>
    %77 = vector.shape_cast %76 : vector<4x16x4xf32> to vector<64x4xf32>
    %c0_42 = arith.constant 0 : index
    %78 = arith.index_cast %73 : i32 to index
    %c1_43 = arith.constant 1 : index
    %c0_44 = arith.constant 0 : index
    %79 = vector.load %arg2[%c0_42, %78, %c1_43, %c0_44] : memref<1x18x18x4xf32, #tpu.memory_space<vmem>>, vector<1x4x16x4xf32>
    %80 = vector.shape_cast %79 : vector<1x4x16x4xf32> to vector<4x16x4xf32>
    %81 = vector.shape_cast %80 : vector<4x16x4xf32> to vector<64x4xf32>
    %c0_45 = arith.constant 0 : index
    %82 = arith.index_cast %73 : i32 to index
    %c2_46 = arith.constant 2 : index
    %c0_47 = arith.constant 0 : index
    %83 = vector.load %arg2[%c0_45, %82, %c2_46, %c0_47] : memref<1x18x18x4xf32, #tpu.memory_space<vmem>>, vector<1x4x16x4xf32>
    %84 = vector.shape_cast %83 : vector<1x4x16x4xf32> to vector<4x16x4xf32>
    %85 = vector.shape_cast %84 : vector<4x16x4xf32> to vector<64x4xf32>
    %86 = tpu.concatenate %77, %81, %85 in 1 : vector<64x4xf32>, vector<64x4xf32>, vector<64x4xf32> -> vector<64x12xf32>
    %87 = arith.index_cast %11 : i32 to index
    %c64 = arith.constant 64 : index
    %c0_48 = arith.constant 0 : index
    %88 = vector.load %arg6[%87, %c64, %c0_48] : memref<2x256x128xf32, #tpu.memory_space<vmem>>, vector<1x64x12xf32>
    %89 = vector.shape_cast %88 : vector<1x64x12xf32> to vector<64x12xf32>
    %90 = vector.shape_cast %86 : vector<64x12xf32> to vector<1x64x12xf32>
    tpu.vector_store %arg6[%87, %c64, %c0_48], %90 {strides = array<i32>} : memref<2x256x128xf32, #tpu.memory_space<vmem>>, vector<1x64x12xf32>,
    %c4_i32_49 = arith.constant 4 : i32
    %91 = arith.addi %13, %c4_i32_49 : i32
    %c1_i32_50 = arith.constant 1 : i32
    %92 = arith.addi %91, %c1_i32_50 : i32
    %c0_51 = arith.constant 0 : index
    %93 = arith.index_cast %92 : i32 to index
    %c0_52 = arith.constant 0 : index
    %c0_53 = arith.constant 0 : index
    %94 = vector.load %arg2[%c0_51, %93, %c0_52, %c0_53] : memref<1x18x18x4xf32, #tpu.memory_space<vmem>>, vector<1x4x16x4xf32>
    %95 = vector.shape_cast %94 : vector<1x4x16x4xf32> to vector<4x16x4xf32>
    %96 = vector.shape_cast %95 : vector<4x16x4xf32> to vector<64x4xf32>
    %c0_54 = arith.constant 0 : index
    %97 = arith.index_cast %92 : i32 to index
    %c1_55 = arith.constant 1 : index
    %c0_56 = arith.constant 0 : index
    %98 = vector.load %arg2[%c0_54, %97, %c1_55, %c0_56] : memref<1x18x18x4xf32, #tpu.memory_space<vmem>>, vector<1x4x16x4xf32>
    %99 = vector.shape_cast %98 : vector<1x4x16x4xf32> to vector<4x16x4xf32>
    %100 = vector.shape_cast %99 : vector<4x16x4xf32> to vector<64x4xf32>
    %c0_57 = arith.constant 0 : index
    %101 = arith.index_cast %92 : i32 to index
    %c2_58 = arith.constant 2 : index
    %c0_59 = arith.constant 0 : index
    %102 = vector.load %arg2[%c0_57, %101, %c2_58, %c0_59] : memref<1x18x18x4xf32, #tpu.memory_space<vmem>>, vector<1x4x16x4xf32>
    %103 = vector.shape_cast %102 : vector<1x4x16x4xf32> to vector<4x16x4xf32>
    %104 = vector.shape_cast %103 : vector<4x16x4xf32> to vector<64x4xf32>
    %105 = tpu.concatenate %96, %100, %104 in 1 : vector<64x4xf32>, vector<64x4xf32>, vector<64x4xf32> -> vector<64x12xf32>
    %106 = arith.index_cast %11 : i32 to index
    %c64_60 = arith.constant 64 : index
    %c12_61 = arith.constant 12 : index
    %107 = vector.load %arg6[%106, %c64_60, %c12_61] : memref<2x256x128xf32, #tpu.memory_space<vmem>>, vector<1x64x12xf32>
    %108 = vector.shape_cast %107 : vector<1x64x12xf32> to vector<64x12xf32>
    %109 = vector.shape_cast %105 : vector<64x12xf32> to vector<1x64x12xf32>
    tpu.vector_store %arg6[%106, %c64_60, %c12_61], %109 {strides = array<i32>} : memref<2x256x128xf32, #tpu.memory_space<vmem>>, vector<1x64x12xf32>,
    %c4_i32_62 = arith.constant 4 : i32
    %110 = arith.addi %13, %c4_i32_62 : i32
    %c2_i32_63 = arith.constant 2 : i32
    %111 = arith.addi %110, %c2_i32_63 : i32
    %c0_64 = arith.constant 0 : index
    %112 = arith.index_cast %111 : i32 to index
    %c0_65 = arith.constant 0 : index
    %c0_66 = arith.constant 0 : index
    %113 = vector.load %arg2[%c0_64, %112, %c0_65, %c0_66] : memref<1x18x18x4xf32, #tpu.memory_space<vmem>>, vector<1x4x16x4xf32>
    %114 = vector.shape_cast %113 : vector<1x4x16x4xf32> to vector<4x16x4xf32>
    %115 = vector.shape_cast %114 : vector<4x16x4xf32> to vector<64x4xf32>
    %c0_67 = arith.constant 0 : index
    %116 = arith.index_cast %111 : i32 to index
    %c1_68 = arith.constant 1 : index
    %c0_69 = arith.constant 0 : index
    %117 = vector.load %arg2[%c0_67, %116, %c1_68, %c0_69] : memref<1x18x18x4xf32, #tpu.memory_space<vmem>>, vector<1x4x16x4xf32>
    %118 = vector.shape_cast %117 : vector<1x4x16x4xf32> to vector<4x16x4xf32>
    %119 = vector.shape_cast %118 : vector<4x16x4xf32> to vector<64x4xf32>
    %c0_70 = arith.constant 0 : index
    %120 = arith.index_cast %111 : i32 to index
    %c2_71 = arith.constant 2 : index
    %c0_72 = arith.constant 0 : index
    %121 = vector.load %arg2[%c0_70, %120, %c2_71, %c0_72] : memref<1x18x18x4xf32, #tpu.memory_space<vmem>>, vector<1x4x16x4xf32>
    %122 = vector.shape_cast %121 : vector<1x4x16x4xf32> to vector<4x16x4xf32>
    %123 = vector.shape_cast %122 : vector<4x16x4xf32> to vector<64x4xf32>
    %cst_73 = arith.constant 0.000000e+00 : f32
    %124 = vector.broadcast %cst_73 : f32 to vector<64x92xf32>
    %125 = tpu.concatenate %115, %119, %123, %124 in 1 : vector<64x4xf32>, vector<64x4xf32>, vector<64x4xf32>, vector<64x92xf32> -> vector<64x104xf32>
    %126 = arith.index_cast %11 : i32 to index
    %c64_74 = arith.constant 64 : index
    %c24_75 = arith.constant 24 : index
    %127 = vector.load %arg6[%126, %c64_74, %c24_75] : memref<2x256x128xf32, #tpu.memory_space<vmem>>, vector<1x64x104xf32>
    %128 = vector.shape_cast %127 : vector<1x64x104xf32> to vector<64x104xf32>
    %129 = vector.shape_cast %125 : vector<64x104xf32> to vector<1x64x104xf32>
    tpu.vector_store %arg6[%126, %c64_74, %c24_75], %129 {strides = array<i32>} : memref<2x256x128xf32, #tpu.memory_space<vmem>>, vector<1x64x104xf32>,
    %c8_i32 = arith.constant 8 : i32
    %130 = arith.addi %13, %c8_i32 : i32
    %c0_i32_76 = arith.constant 0 : i32
    %131 = arith.addi %130, %c0_i32_76 : i32
    %c0_77 = arith.constant 0 : index
    %132 = arith.index_cast %131 : i32 to index
    %c0_78 = arith.constant 0 : index
    %c0_79 = arith.constant 0 : index
    %133 = vector.load %arg2[%c0_77, %132, %c0_78, %c0_79] : memref<1x18x18x4xf32, #tpu.memory_space<vmem>>, vector<1x4x16x4xf32>
    %134 = vector.shape_cast %133 : vector<1x4x16x4xf32> to vector<4x16x4xf32>
    %135 = vector.shape_cast %134 : vector<4x16x4xf32> to vector<64x4xf32>
    %c0_80 = arith.constant 0 : index
    %136 = arith.index_cast %131 : i32 to index
    %c1_81 = arith.constant 1 : index
    %c0_82 = arith.constant 0 : index
    %137 = vector.load %arg2[%c0_80, %136, %c1_81, %c0_82] : memref<1x18x18x4xf32, #tpu.memory_space<vmem>>, vector<1x4x16x4xf32>
    %138 = vector.shape_cast %137 : vector<1x4x16x4xf32> to vector<4x16x4xf32>
    %139 = vector.shape_cast %138 : vector<4x16x4xf32> to vector<64x4xf32>
    %c0_83 = arith.constant 0 : index
    %140 = arith.index_cast %131 : i32 to index
    %c2_84 = arith.constant 2 : index
    %c0_85 = arith.constant 0 : index
    %141 = vector.load %arg2[%c0_83, %140, %c2_84, %c0_85] : memref<1x18x18x4xf32, #tpu.memory_space<vmem>>, vector<1x4x16x4xf32>
    %142 = vector.shape_cast %141 : vector<1x4x16x4xf32> to vector<4x16x4xf32>
    %143 = vector.shape_cast %142 : vector<4x16x4xf32> to vector<64x4xf32>
    %144 = tpu.concatenate %135, %139, %143 in 1 : vector<64x4xf32>, vector<64x4xf32>, vector<64x4xf32> -> vector<64x12xf32>
    %145 = arith.index_cast %11 : i32 to index
    %c128 = arith.constant 128 : index
    %c0_86 = arith.constant 0 : index
    %146 = vector.load %arg6[%145, %c128, %c0_86] : memref<2x256x128xf32, #tpu.memory_space<vmem>>, vector<1x64x12xf32>
    %147 = vector.shape_cast %146 : vector<1x64x12xf32> to vector<64x12xf32>
    %148 = vector.shape_cast %144 : vector<64x12xf32> to vector<1x64x12xf32>
    tpu.vector_store %arg6[%145, %c128, %c0_86], %148 {strides = array<i32>} : memref<2x256x128xf32, #tpu.memory_space<vmem>>, vector<1x64x12xf32>,
    %c8_i32_87 = arith.constant 8 : i32
    %149 = arith.addi %13, %c8_i32_87 : i32
    %c1_i32_88 = arith.constant 1 : i32
    %150 = arith.addi %149, %c1_i32_88 : i32
    %c0_89 = arith.constant 0 : index
    %151 = arith.index_cast %150 : i32 to index
    %c0_90 = arith.constant 0 : index
    %c0_91 = arith.constant 0 : index
    %152 = vector.load %arg2[%c0_89, %151, %c0_90, %c0_91] : memref<1x18x18x4xf32, #tpu.memory_space<vmem>>, vector<1x4x16x4xf32>
    %153 = vector.shape_cast %152 : vector<1x4x16x4xf32> to vector<4x16x4xf32>
    %154 = vector.shape_cast %153 : vector<4x16x4xf32> to vector<64x4xf32>
    %c0_92 = arith.constant 0 : index
    %155 = arith.index_cast %150 : i32 to index
    %c1_93 = arith.constant 1 : index
    %c0_94 = arith.constant 0 : index
    %156 = vector.load %arg2[%c0_92, %155, %c1_93, %c0_94] : memref<1x18x18x4xf32, #tpu.memory_space<vmem>>, vector<1x4x16x4xf32>
    %157 = vector.shape_cast %156 : vector<1x4x16x4xf32> to vector<4x16x4xf32>
    %158 = vector.shape_cast %157 : vector<4x16x4xf32> to vector<64x4xf32>
    %c0_95 = arith.constant 0 : index
    %159 = arith.index_cast %150 : i32 to index
    %c2_96 = arith.constant 2 : index
    %c0_97 = arith.constant 0 : index
    %160 = vector.load %arg2[%c0_95, %159, %c2_96, %c0_97] : memref<1x18x18x4xf32, #tpu.memory_space<vmem>>, vector<1x4x16x4xf32>
    %161 = vector.shape_cast %160 : vector<1x4x16x4xf32> to vector<4x16x4xf32>
    %162 = vector.shape_cast %161 : vector<4x16x4xf32> to vector<64x4xf32>
    %163 = tpu.concatenate %154, %158, %162 in 1 : vector<64x4xf32>, vector<64x4xf32>, vector<64x4xf32> -> vector<64x12xf32>
    %164 = arith.index_cast %11 : i32 to index
    %c128_98 = arith.constant 128 : index
    %c12_99 = arith.constant 12 : index
    %165 = vector.load %arg6[%164, %c128_98, %c12_99] : memref<2x256x128xf32, #tpu.memory_space<vmem>>, vector<1x64x12xf32>
    %166 = vector.shape_cast %165 : vector<1x64x12xf32> to vector<64x12xf32>
    %167 = vector.shape_cast %163 : vector<64x12xf32> to vector<1x64x12xf32>
    tpu.vector_store %arg6[%164, %c128_98, %c12_99], %167 {strides = array<i32>} : memref<2x256x128xf32, #tpu.memory_space<vmem>>, vector<1x64x12xf32>,
    %c8_i32_100 = arith.constant 8 : i32
    %168 = arith.addi %13, %c8_i32_100 : i32
    %c2_i32_101 = arith.constant 2 : i32
    %169 = arith.addi %168, %c2_i32_101 : i32
    %c0_102 = arith.constant 0 : index
    %170 = arith.index_cast %169 : i32 to index
    %c0_103 = arith.constant 0 : index
    %c0_104 = arith.constant 0 : index
    %171 = vector.load %arg2[%c0_102, %170, %c0_103, %c0_104] : memref<1x18x18x4xf32, #tpu.memory_space<vmem>>, vector<1x4x16x4xf32>
    %172 = vector.shape_cast %171 : vector<1x4x16x4xf32> to vector<4x16x4xf32>
    %173 = vector.shape_cast %172 : vector<4x16x4xf32> to vector<64x4xf32>
    %c0_105 = arith.constant 0 : index
    %174 = arith.index_cast %169 : i32 to index
    %c1_106 = arith.constant 1 : index
    %c0_107 = arith.constant 0 : index
    %175 = vector.load %arg2[%c0_105, %174, %c1_106, %c0_107] : memref<1x18x18x4xf32, #tpu.memory_space<vmem>>, vector<1x4x16x4xf32>
    %176 = vector.shape_cast %175 : vector<1x4x16x4xf32> to vector<4x16x4xf32>
    %177 = vector.shape_cast %176 : vector<4x16x4xf32> to vector<64x4xf32>
    %c0_108 = arith.constant 0 : index
    %178 = arith.index_cast %169 : i32 to index
    %c2_109 = arith.constant 2 : index
    %c0_110 = arith.constant 0 : index
    %179 = vector.load %arg2[%c0_108, %178, %c2_109, %c0_110] : memref<1x18x18x4xf32, #tpu.memory_space<vmem>>, vector<1x4x16x4xf32>
    %180 = vector.shape_cast %179 : vector<1x4x16x4xf32> to vector<4x16x4xf32>
    %181 = vector.shape_cast %180 : vector<4x16x4xf32> to vector<64x4xf32>
    %cst_111 = arith.constant 0.000000e+00 : f32
    %182 = vector.broadcast %cst_111 : f32 to vector<64x92xf32>
    %183 = tpu.concatenate %173, %177, %181, %182 in 1 : vector<64x4xf32>, vector<64x4xf32>, vector<64x4xf32>, vector<64x92xf32> -> vector<64x104xf32>
    %184 = arith.index_cast %11 : i32 to index
    %c128_112 = arith.constant 128 : index
    %c24_113 = arith.constant 24 : index
    %185 = vector.load %arg6[%184, %c128_112, %c24_113] : memref<2x256x128xf32, #tpu.memory_space<vmem>>, vector<1x64x104xf32>
    %186 = vector.shape_cast %185 : vector<1x64x104xf32> to vector<64x104xf32>
    %187 = vector.shape_cast %183 : vector<64x104xf32> to vector<1x64x104xf32>
    tpu.vector_store %arg6[%184, %c128_112, %c24_113], %187 {strides = array<i32>} : memref<2x256x128xf32, #tpu.memory_space<vmem>>, vector<1x64x104xf32>,
    %c12_i32 = arith.constant 12 : i32
    %188 = arith.addi %13, %c12_i32 : i32
    %c0_i32_114 = arith.constant 0 : i32
    %189 = arith.addi %188, %c0_i32_114 : i32
    %c0_115 = arith.constant 0 : index
    %190 = arith.index_cast %189 : i32 to index
    %c0_116 = arith.constant 0 : index
    %c0_117 = arith.constant 0 : index
    %191 = vector.load %arg2[%c0_115, %190, %c0_116, %c0_117] : memref<1x18x18x4xf32, #tpu.memory_space<vmem>>, vector<1x4x16x4xf32>
    %192 = vector.shape_cast %191 : vector<1x4x16x4xf32> to vector<4x16x4xf32>
    %193 = vector.shape_cast %192 : vector<4x16x4xf32> to vector<64x4xf32>
    %c0_118 = arith.constant 0 : index
    %194 = arith.index_cast %189 : i32 to index
    %c1_119 = arith.constant 1 : index
    %c0_120 = arith.constant 0 : index
    %195 = vector.load %arg2[%c0_118, %194, %c1_119, %c0_120] : memref<1x18x18x4xf32, #tpu.memory_space<vmem>>, vector<1x4x16x4xf32>
    %196 = vector.shape_cast %195 : vector<1x4x16x4xf32> to vector<4x16x4xf32>
    %197 = vector.shape_cast %196 : vector<4x16x4xf32> to vector<64x4xf32>
    %c0_121 = arith.constant 0 : index
    %198 = arith.index_cast %189 : i32 to index
    %c2_122 = arith.constant 2 : index
    %c0_123 = arith.constant 0 : index
    %199 = vector.load %arg2[%c0_121, %198, %c2_122, %c0_123] : memref<1x18x18x4xf32, #tpu.memory_space<vmem>>, vector<1x4x16x4xf32>
    %200 = vector.shape_cast %199 : vector<1x4x16x4xf32> to vector<4x16x4xf32>
    %201 = vector.shape_cast %200 : vector<4x16x4xf32> to vector<64x4xf32>
    %202 = tpu.concatenate %193, %197, %201 in 1 : vector<64x4xf32>, vector<64x4xf32>, vector<64x4xf32> -> vector<64x12xf32>
    %203 = arith.index_cast %11 : i32 to index
    %c192 = arith.constant 192 : index
    %c0_124 = arith.constant 0 : index
    %204 = vector.load %arg6[%203, %c192, %c0_124] : memref<2x256x128xf32, #tpu.memory_space<vmem>>, vector<1x64x12xf32>
    %205 = vector.shape_cast %204 : vector<1x64x12xf32> to vector<64x12xf32>
    %206 = vector.shape_cast %202 : vector<64x12xf32> to vector<1x64x12xf32>
    tpu.vector_store %arg6[%203, %c192, %c0_124], %206 {strides = array<i32>} : memref<2x256x128xf32, #tpu.memory_space<vmem>>, vector<1x64x12xf32>,
    %c12_i32_125 = arith.constant 12 : i32
    %207 = arith.addi %13, %c12_i32_125 : i32
    %c1_i32_126 = arith.constant 1 : i32
    %208 = arith.addi %207, %c1_i32_126 : i32
    %c0_127 = arith.constant 0 : index
    %209 = arith.index_cast %208 : i32 to index
    %c0_128 = arith.constant 0 : index
    %c0_129 = arith.constant 0 : index
    %210 = vector.load %arg2[%c0_127, %209, %c0_128, %c0_129] : memref<1x18x18x4xf32, #tpu.memory_space<vmem>>, vector<1x4x16x4xf32>
    %211 = vector.shape_cast %210 : vector<1x4x16x4xf32> to vector<4x16x4xf32>
    %212 = vector.shape_cast %211 : vector<4x16x4xf32> to vector<64x4xf32>
    %c0_130 = arith.constant 0 : index
    %213 = arith.index_cast %208 : i32 to index
    %c1_131 = arith.constant 1 : index
    %c0_132 = arith.constant 0 : index
    %214 = vector.load %arg2[%c0_130, %213, %c1_131, %c0_132] : memref<1x18x18x4xf32, #tpu.memory_space<vmem>>, vector<1x4x16x4xf32>
    %215 = vector.shape_cast %214 : vector<1x4x16x4xf32> to vector<4x16x4xf32>
    %216 = vector.shape_cast %215 : vector<4x16x4xf32> to vector<64x4xf32>
    %c0_133 = arith.constant 0 : index
    %217 = arith.index_cast %208 : i32 to index
    %c2_134 = arith.constant 2 : index
    %c0_135 = arith.constant 0 : index
    %218 = vector.load %arg2[%c0_133, %217, %c2_134, %c0_135] : memref<1x18x18x4xf32, #tpu.memory_space<vmem>>, vector<1x4x16x4xf32>
    %219 = vector.shape_cast %218 : vector<1x4x16x4xf32> to vector<4x16x4xf32>
    %220 = vector.shape_cast %219 : vector<4x16x4xf32> to vector<64x4xf32>
    %221 = tpu.concatenate %212, %216, %220 in 1 : vector<64x4xf32>, vector<64x4xf32>, vector<64x4xf32> -> vector<64x12xf32>
    %222 = arith.index_cast %11 : i32 to index
    %c192_136 = arith.constant 192 : index
    %c12_137 = arith.constant 12 : index
    %223 = vector.load %arg6[%222, %c192_136, %c12_137] : memref<2x256x128xf32, #tpu.memory_space<vmem>>, vector<1x64x12xf32>
    %224 = vector.shape_cast %223 : vector<1x64x12xf32> to vector<64x12xf32>
    %225 = vector.shape_cast %221 : vector<64x12xf32> to vector<1x64x12xf32>
    tpu.vector_store %arg6[%222, %c192_136, %c12_137], %225 {strides = array<i32>} : memref<2x256x128xf32, #tpu.memory_space<vmem>>, vector<1x64x12xf32>,
    %c12_i32_138 = arith.constant 12 : i32
    %226 = arith.addi %13, %c12_i32_138 : i32
    %c2_i32_139 = arith.constant 2 : i32
    %227 = arith.addi %226, %c2_i32_139 : i32
    %c0_140 = arith.constant 0 : index
    %228 = arith.index_cast %227 : i32 to index
    %c0_141 = arith.constant 0 : index
    %c0_142 = arith.constant 0 : index
    %229 = vector.load %arg2[%c0_140, %228, %c0_141, %c0_142] : memref<1x18x18x4xf32, #tpu.memory_space<vmem>>, vector<1x4x16x4xf32>
    %230 = vector.shape_cast %229 : vector<1x4x16x4xf32> to vector<4x16x4xf32>
    %231 = vector.shape_cast %230 : vector<4x16x4xf32> to vector<64x4xf32>
    %c0_143 = arith.constant 0 : index
    %232 = arith.index_cast %227 : i32 to index
    %c1_144 = arith.constant 1 : index
    %c0_145 = arith.constant 0 : index
    %233 = vector.load %arg2[%c0_143, %232, %c1_144, %c0_145] : memref<1x18x18x4xf32, #tpu.memory_space<vmem>>, vector<1x4x16x4xf32>
    %234 = vector.shape_cast %233 : vector<1x4x16x4xf32> to vector<4x16x4xf32>
    %235 = vector.shape_cast %234 : vector<4x16x4xf32> to vector<64x4xf32>
    %c0_146 = arith.constant 0 : index
    %236 = arith.index_cast %227 : i32 to index
    %c2_147 = arith.constant 2 : index
    %c0_148 = arith.constant 0 : index
    %237 = vector.load %arg2[%c0_146, %236, %c2_147, %c0_148] : memref<1x18x18x4xf32, #tpu.memory_space<vmem>>, vector<1x4x16x4xf32>
    %238 = vector.shape_cast %237 : vector<1x4x16x4xf32> to vector<4x16x4xf32>
    %239 = vector.shape_cast %238 : vector<4x16x4xf32> to vector<64x4xf32>
    %cst_149 = arith.constant 0.000000e+00 : f32
    %240 = vector.broadcast %cst_149 : f32 to vector<64x92xf32>
    %241 = tpu.concatenate %231, %235, %239, %240 in 1 : vector<64x4xf32>, vector<64x4xf32>, vector<64x4xf32>, vector<64x92xf32> -> vector<64x104xf32>
    %242 = arith.index_cast %11 : i32 to index
    %c192_150 = arith.constant 192 : index
    %c24_151 = arith.constant 24 : index
    %243 = vector.load %arg6[%242, %c192_150, %c24_151] : memref<2x256x128xf32, #tpu.memory_space<vmem>>, vector<1x64x104xf32>
    %244 = vector.shape_cast %243 : vector<1x64x104xf32> to vector<64x104xf32>
    %245 = vector.shape_cast %241 : vector<64x104xf32> to vector<1x64x104xf32>
    tpu.vector_store %arg6[%242, %c192_150, %c24_151], %245 {strides = array<i32>} : memref<2x256x128xf32, #tpu.memory_space<vmem>>, vector<1x64x104xf32>,
    %246 = arith.index_cast %11 : i32 to index
    %c0_152 = arith.constant 0 : index
    %c0_153 = arith.constant 0 : index
    %247 = vector.load %arg6[%246, %c0_152, %c0_153] : memref<2x256x128xf32, #tpu.memory_space<vmem>>, vector<1x256x128xf32>
    %248 = vector.shape_cast %247 : vector<1x256x128xf32> to vector<256x128xf32>
    %c0_154 = arith.constant 0 : index
    %c0_155 = arith.constant 0 : index
    %249 = vector.load %arg3[%c0_154, %c0_155] : memref<128x128xf32, #tpu.memory_space<vmem>>, vector<128x128xf32>
    %cst_156 = arith.constant dense<0.000000e+00> : vector<256x128xf32>
    %250 = tpu.matmul %248, %249, %cst_156 {dimension_numbers = #tpu.dot_dimension_numbers<[1], [0], [0], [1], [0, 0, 1, 1], [], []>} : vector<256x128xf32>, vector<128x128xf32>, vector<256x128xf32> -> vector<256x128xf32>
    %c0_157 = arith.constant 0 : index
    %c0_158 = arith.constant 0 : index
    %251 = vector.load %arg4[%c0_157, %c0_158] : memref<1x128xf32, #tpu.memory_space<vmem>>, vector<1x128xf32>
    %252 = vector.broadcast %251 : vector<1x128xf32> to vector<256x128xf32>
    %253 = arith.addf %250, %252 : vector<256x128xf32>
    %254 = vector.shape_cast %253 : vector<256x128xf32> to vector<16x16x128xf32>
    %c0_159 = arith.constant 0 : index
    %c0_160 = arith.constant 0 : index
    %c0_161 = arith.constant 0 : index
    %c0_162 = arith.constant 0 : index
    %255 = vector.load %arg5[%c0_159, %c0_160, %c0_161, %c0_162] : memref<1x16x16x128xf32, #tpu.memory_space<vmem>>, vector<1x16x16x128xf32>
    %256 = vector.shape_cast %255 : vector<1x16x16x128xf32> to vector<16x16x128xf32>
    %257 = vector.shape_cast %254 : vector<16x16x128xf32> to vector<1x16x16x128xf32>
    tpu.vector_store %arg5[%c0_159, %c0_160, %c0_161, %c0_162], %257 {strides = array<i32>} : memref<1x16x16x128xf32, #tpu.memory_space<vmem>>, vector<1x16x16x128xf32>,
    return
  }
  func.func @transform_0(%arg0: i32, %arg1: i32) -> (i32, i32, i32, i32) {
    %c0_i32 = arith.constant 0 : i32
    %c0_i32_0 = arith.constant 0 : i32
    %c0_i32_1 = arith.constant 0 : i32
    %c0_i32_2 = arith.constant 0 : i32
    return %arg0, %c0_i32, %c0_i32_0, %c0_i32_1 : i32, i32, i32, i32
  }
  func.func @transform_1(%arg0: i32, %arg1: i32) -> (i32, i32) {
    %c0_i32 = arith.constant 0 : i32
    %c0_i32_0 = arith.constant 0 : i32
    %c0_i32_1 = arith.constant 0 : i32
    return %c0_i32, %c0_i32_0 : i32, i32
  }
  func.func @transform_2(%arg0: i32, %arg1: i32) -> (i32, i32) {
    %c0_i32 = arith.constant 0 : i32
    %c0_i32_0 = arith.constant 0 : i32
    %c0_i32_1 = arith.constant 0 : i32
    return %c0_i32, %c0_i32_0 : i32, i32
  }
  func.func @transform_3(%arg0: i32, %arg1: i32) -> (i32, i32, i32, i32) {
    %c0_i32 = arith.constant 0 : i32
    %c0_i32_0 = arith.constant 0 : i32
    %c0_i32_1 = arith.constant 0 : i32
    return %arg0, %arg1, %c0_i32, %c0_i32_0 : i32, i32, i32, i32
  }
}

</mosaic_0001>

<llo_original>
// kernel: tpu_custom_call.1
$region0: #{tpu_custom_call.1}
  #allocation0 [shape = 'u32[]', space=smem, size = 0x4, offset = 0x4, fixed_abs, tag = 'smem constant byte address 0x4 - core index']
  #allocation1 [shape = 'u32[144,128]{1,0:T(1,128)}', space=vmem, size = 0x12000, scoped, tag = 'internal scratch']
  #allocation2 [shape = 'f32[2,256,128]{2,1,0:T(8,128)}', space=vmem, size = 0x40000, scoped, tag = 'scratch operand']
  %s0 = inlined_call_operand.vmem [shape: f32[2,18,18,4], index: 0, kind: input, shape index: {}]
  %s1 = inlined_call_operand.vmem [shape: f32[128,128], index: 1, kind: input, shape index: {}]
  %s2 = inlined_call_operand.vmem [shape: f32[1,128], index: 2, kind: input, shape index: {}]
  %s3 = inlined_call_operand.hbm [shape: f32[2,16,16,128], index: 3, kind: output, shape index: {}]
  %s4 = sld [smem:[#allocation0]]
  $region45: #{tpu_custom_call.1} parent=0
    _
  %s6 = ssub.s32 1, %s4
  %s7 = scalar_select 0, %s6, %s4
  $region1: #{tpu_custom_call.1} parent=0
    #allocation3 [shape = 'u8[262144]{0}', space=vmem, size = 0x40000, scoped, tag = 'output window, operand 0']
    #allocation4 [shape = 's32[2]{0}', space=sflag, size = 0x8, scoped, tag = 'scoped memory for tpu_custom_call.1']
    %8 = vsyncpa [#allocation4], 0
    %s9 = scalar_lea.sflag [#allocation4], 1
    %10 = vsyncpa %s9, 0
    loop: start=0, step=1, limit=4
    $region2: #{tpu_custom_call.1} parent=1 // loop_pre_header
      _
    $region3: #{tpu_custom_call.1} parent=1 // loop_header
      %s12 = sphi 0, %s16
      %p13 = scmp.ge.s32.totalorder %s12, 4
      %s19 = sphi 0, %s31
      %s20 = sphi 0, %s27
      %s21 = sphi 0, %s19
      %s22 = sphi 0, %s20
      %s23 = sphi 0, %s21
      %s24 = sphi 0, %s22
      %s34 = sphi 0, %s36
      %s37 = sphi 0, %s34
      %s38 = sphi 0, %s37
      %s54 = sphi 0, %s38
      %s58 = sphi 0, %s58
      %s60 = sphi 0, %s58
      %s61 = sphi 0, %s60
      %s75 = sphi 0, %s61
      %s79 = sphi 0, %s79
      %s81 = sphi 0, %s79
      %s82 = sphi 0, %s81
      %s96 = sphi 0, %s82
      %s104 = sphi 0, %s106
      %s107 = sphi 0, %s104
      %s108 = sphi 0, %s107
      %s124 = sphi 0, %s108
    $region4: #{tpu_custom_call.1} parent=1 // loop_header_branch
      %15 = sbr.rel (%p13) target = $region8
    $region5: #{tpu_custom_call.1} parent=1 // loop_body
      %s17 = ssub.s32 %s12, 1
      %s18 = ssub.s32 %s12, 2
      %s25 = sadd.s32 1, %s20
      %p26 = scmp.ge.s32.totalorder %s25, 1
      %s27 = scalar_select %p26, 0, %s25
      %s28 = sadd.s32 1, %s19
      %s29 = scalar_select %p26, %s28, %s19
      %p30 = scmp.ge.s32.totalorder %s29, 2
      %s31 = scalar_select %p30, 0, %s29
      %s32 = ssub.s32 %s19, %s31
      %p33 = scmp.eq.s32.totalorder %s32, 0
      %s35 = sadd.s32 %s34, 1
      %s36 = scalar_select %p33, %s34, %s35
      %p39 = pneg %p33
      %p40 = scmp.eq.s32.totalorder %s12, 1
      %p41 = por %p39, %p40
      %p42 = scmp.ne.s32.totalorder %s34, %s37
      %p43 = scmp.eq.s32.totalorder %s12, 0
      %p44 = por %p42, %p43
      %p45 = scmp.ne.s32.totalorder %s34, %s37
      %p46 = scmp.eq.s32.totalorder %s17, 1
      %p47 = por %p45, %p46
      %p48 = scmp.ne.s32.totalorder %s37, %s38
      %p49 = scmp.eq.s32.totalorder %s17, 0
      %p50 = por %p48, %p49
      %p51 = scmp.ne.s32.totalorder %s37, %s38
      %p52 = scmp.eq.s32.totalorder %s18, 1
      %p53 = por %p51, %p52
      %p55 = scmp.ne.s32.totalorder %s38, %s54
      %p56 = scmp.eq.s32.totalorder %s18, 0
      %p57 = por %p55, %p56
      %s59 = sadd.s32 %s58, 1
      %p62 = scmp.eq.s32.totalorder %s12, 1
      %p63 = scmp.ne.s32.totalorder %s58, %s60
      %p64 = scmp.eq.s32.totalorder %s12, 0
      %p65 = por %p63, %p64
      %p66 = scmp.ne.s32.totalorder %s58, %s60
      %p67 = scmp.eq.s32.totalorder %s17, 1
      %p68 = por %p66, %p67
      %p69 = scmp.ne.s32.totalorder %s60, %s61
      %p70 = scmp.eq.s32.totalorder %s17, 0
      %p71 = por %p69, %p70
      %p72 = scmp.ne.s32.totalorder %s60, %s61
      %p73 = scmp.eq.s32.totalorder %s18, 1
      %p74 = por %p72, %p73
      %p76 = scmp.ne.s32.totalorder %s61, %s75
      %p77 = scmp.eq.s32.totalorder %s18, 0
      %p78 = por %p76, %p77
      %s80 = sadd.s32 %s79, 1
      %p83 = scmp.eq.s32.totalorder %s12, 1
      %p84 = scmp.ne.s32.totalorder %s79, %s81
      %p85 = scmp.eq.s32.totalorder %s12, 0
      %p86 = por %p84, %p85
      %p87 = scmp.ne.s32.totalorder %s79, %s81
      %p88 = scmp.eq.s32.totalorder %s17, 1
      %p89 = por %p87, %p88
      %p90 = scmp.ne.s32.totalorder %s81, %s82
      %p91 = scmp.eq.s32.totalorder %s17, 0
      %p92 = por %p90, %p91
      %p93 = scmp.ne.s32.totalorder %s81, %s82
      %p94 = scmp.eq.s32.totalorder %s18, 1
      %p95 = por %p93, %p94
      %p97 = scmp.ne.s32.totalorder %s82, %s96
      %p98 = scmp.eq.s32.totalorder %s18, 0
      %p99 = por %p97, %p98
      %s100 = ssub.s32 %s19, %s31
      %s101 = ssub.s32 %s20, %s27
      %s102 = sor.u32 %s100, %s101
      %p103 = scmp.eq.s32.totalorder %s102, 0
      %s105 = sadd.s32 %s104, 1
      %s106 = scalar_select %p103, %s104, %s105
      %p109 = pneg %p103
      %p110 = scmp.eq.s32.totalorder %s12, 1
      %p111 = por %p109, %p110
      %p112 = scmp.ne.s32.totalorder %s104, %s107
      %p113 = scmp.eq.s32.totalorder %s12, 0
      %p114 = por %p112, %p113
      %p115 = scmp.ne.s32.totalorder %s104, %s107
      %p116 = scmp.eq.s32.totalorder %s17, 1
      %p117 = por %p115, %p116
      %p118 = scmp.ne.s32.totalorder %s107, %s108
      %p119 = scmp.eq.s32.totalorder %s17, 0
      %p120 = por %p118, %p119
      %p121 = scmp.ne.s32.totalorder %s107, %s108
      %p122 = scmp.eq.s32.totalorder %s18, 1
      %p123 = por %p121, %p122
      %p125 = scmp.ne.s32.totalorder %s108, %s124
      %p126 = scmp.eq.s32.totalorder %s18, 0
      %p127 = por %p125, %p126
      %p128 = scmp.le.s32.totalorder 1, %s12
      %p129 = scmp.lt.s32.totalorder %s12, 3
      %p130 = pnand %p128, %p129
      %p131 = pneg %p130
      // Predicated region
      $region9: #{tpu_custom_call.1} parent=5 // pred_check
        _
      $region10: #{tpu_custom_call.1} parent=5 // pred_check_branch
        %133 = sbr.rel (%p130) target = $region12
      $region11: #{tpu_custom_call.1} parent=5 // pred_region
        %s134 = ssub.s32 %s12, 1
        // Predicated region
        $region13: #{tpu_custom_call.1} parent=11 // pred_check
          %p135 = pneg %p71
        $region14: #{tpu_custom_call.1} parent=11 // pred_check_branch
          %137 = sbr.rel (%p135) target = $region16
        $region15: #{tpu_custom_call.1} parent=11 // pred_region
          _
        $region16: #{tpu_custom_call.1} parent=11 // pred_fallthru
          _
        // Predicated region
        $region17: #{tpu_custom_call.1} parent=11 // pred_check
          %p138 = pneg %p92
        $region18: #{tpu_custom_call.1} parent=11 // pred_check_branch
          %140 = sbr.rel (%p138) target = $region20
        $region19: #{tpu_custom_call.1} parent=11 // pred_region
          _
        $region20: #{tpu_custom_call.1} parent=11 // pred_fallthru
          _
      $region12: #{tpu_custom_call.1} parent=5 // pred_fallthru
        _
      %p141 = scmp.lt.s32.totalorder %s12, 2
      // Predicated region
      $region21: #{tpu_custom_call.1} parent=5 // pred_check
        %p142 = pneg %p141
      $region22: #{tpu_custom_call.1} parent=5 // pred_check_branch
        %144 = sbr.rel (%p142) target = $region24
      $region23: #{tpu_custom_call.1} parent=5 // pred_region
        // Predicated region
        $region25: #{tpu_custom_call.1} parent=23 // pred_check
          %p145 = pneg %p44
        $region26: #{tpu_custom_call.1} parent=23 // pred_check_branch
          %147 = sbr.rel (%p145) target = $region28
        $region27: #{tpu_custom_call.1} parent=23 // pred_region
          %p148 = scmp.lt.s32.totalorder %s19, 1
          %s149 = scalar_select %p148, %s19, 1
          %s150 = smul.addr %s149, 54
          %s151 = smul.addr %s150, 8
          %s152 = scalar_lea.vmem %s0, %s151
        $region28: #{tpu_custom_call.1} parent=23 // pred_fallthru
          _
      $region24: #{tpu_custom_call.1} parent=5 // pred_fallthru
        _
      %p153 = scmp.le.s32.totalorder 1, %s12
      %p154 = scmp.lt.s32.totalorder %s12, 3
      %p155 = pnand %p153, %p154
      %p156 = pneg %p155
      // Predicated region
      $region29: #{tpu_custom_call.1} parent=5 // pred_check
        _
      $region30: #{tpu_custom_call.1} parent=5 // pred_check_branch
        %158 = sbr.rel (%p155) target = $region32
      $region31: #{tpu_custom_call.1} parent=5 // pred_region
        %s159 = ssub.s32 %s12, 1
        %p160 = scmp.lt.s32.totalorder %s21, 1
        %s161 = scalar_select %p160, %s21, 1
        %s162 = smul.addr %s161, 54
        %s163 = smul.addr %s162, 8
        %s164 = scalar_lea.vmem %s0, %s163
        %p165 = pneg %p50
        %p166 = pneg %p47
        %p167 = pneg %p71
        %p168 = pneg %p68
        %p169 = pneg %p92
        %p170 = pneg %p89
        %p171 = pneg %p120
        %p172 = pneg %p117
        %s173 = sand.u32 %s107, 1
        %s174 = scalar_lea.sflag [#allocation4], %s173
        %s175 = sand.u32 %s107, 1
        %s176 = smul.addr %s175, 256
        %s177 = scalar_lea.vmem [#allocation3], %s176
        %p178 = scmp.lt.s32.totalorder %s21, 1
        %s179 = scalar_select %p178, %s21, 1
        %s180 = smul.addr %s179, 54
        %s181 = smul.addr %s180, 8
        %s182 = scalar_lea.vmem %s0, %s181
        %s183 = smul.u32 16, %s22
        %s184 = sadd.s32 %s21, %s22
        %p185 = scmp.lt.s32.totalorder %s184, 0
        %s186 = ssub.s32 0, %s184
        %s187 = scalar_select %p185, %s186, %s184
        %s188 = sand.u32 %s187, 1
        %s189 = ssub.s32 0, %s188
        %s190 = scalar_select %p185, %s189, %s188
        %p191 = scmp.ne.s32.totalorder %s190, 0
        %p192 = scmp.lt.s32.totalorder %s190, 0
        %p193 = pnand %p192, %p191
        %p194 = pneg %p193
        %s195 = sadd.s32 %s190, 2
        %s196 = scalar_select %p194, %s195, %s190
        %s197 = smul.u32 %s22, 16
        %s198 = smul.u32 %s197, 24
        %s199 = scalar_lea.vmem %s182, %s198
        %v200 = vld [vmem:[%s199] sm:$0xff]
        %v201 = vld [vmem:[%s199 + $0x8] sm:$0xff]
        %v202 = vld [vmem:[%s199 + $0x18] sm:$0xff]
        %v203 = vld [vmem:[%s199 + $0x20] sm:$0xff]
        %v204 = vld [vmem:[%s199 + $0x30] sm:$0xff]
        %v205 = vld [vmem:[%s199 + $0x38] sm:$0xff]
        %v206 = vld [vmem:[%s199 + $0x48] sm:$0xff]
        %v207 = vld [vmem:[%s199 + $0x50] sm:$0xff]
        %v208 = vld [vmem:[%s199 + $0x1] sm:$0xff]
        %v209 = vld [vmem:[%s199 + $0x9] sm:$0xff]
        %v210 = vld [vmem:[%s199 + $0x19] sm:$0xff]
        %v211 = vld [vmem:[%s199 + $0x21] sm:$0xff]
        %v212 = vld [vmem:[%s199 + $0x31] sm:$0xff]
        %v213 = vld [vmem:[%s199 + $0x39] sm:$0xff]
        %v214 = vld [vmem:[%s199 + $0x49] sm:$0xff]
        %v215 = vld [vmem:[%s199 + $0x51] sm:$0xff]
        %v216 = vld [vmem:[%s199 + $0x2] sm:$0xff]
        %v217 = vld [vmem:[%s199 + $0xa] sm:$0xff]
        %v218 = vld [vmem:[%s199 + $0x1a] sm:$0xff]
        %v219 = vld [vmem:[%s199 + $0x22] sm:$0xff]
        %v220 = vld [vmem:[%s199 + $0x32] sm:$0xff]
        %v221 = vld [vmem:[%s199 + $0x3a] sm:$0xff]
        %v222 = vld [vmem:[%s199 + $0x4a] sm:$0xff]
        %v223 = vld [vmem:[%s199 + $0x52] sm:$0xff]
        %232 = vrot.lane.b32.xlu0 %v208, 4
        %v233 = vpop.permute.xlu0 %232
        %234 = vrot.lane.b32.xlu0 %v209, 4
        %v235 = vpop.permute.xlu0 %234
        %236 = vrot.lane.b32.xlu0 %v210, 4
        %v237 = vpop.permute.xlu0 %236
        %238 = vrot.lane.b32.xlu0 %v211, 4
        %v239 = vpop.permute.xlu0 %238
        %240 = vrot.lane.b32.xlu0 %v212, 4
        %v241 = vpop.permute.xlu0 %240
        %242 = vrot.lane.b32.xlu0 %v213, 4
        %v243 = vpop.permute.xlu0 %242
        %244 = vrot.lane.b32.xlu0 %v214, 4
        %v245 = vpop.permute.xlu0 %244
        %246 = vrot.lane.b32.xlu0 %v215, 4
        %v247 = vpop.permute.xlu0 %246
        %264 = vrot.lane.b32.xlu0 %v216, 8
        %v265 = vpop.permute.xlu0 %264
        %266 = vrot.lane.b32.xlu0 %v217, 8
        %v267 = vpop.permute.xlu0 %266
        %268 = vrot.lane.b32.xlu0 %v218, 8
        %v269 = vpop.permute.xlu0 %268
        %270 = vrot.lane.b32.xlu0 %v219, 8
        %v271 = vpop.permute.xlu0 %270
        %272 = vrot.lane.b32.xlu0 %v220, 8
        %v273 = vpop.permute.xlu0 %272
        %274 = vrot.lane.b32.xlu0 %v221, 8
        %v275 = vpop.permute.xlu0 %274
        %276 = vrot.lane.b32.xlu0 %v222, 8
        %v277 = vpop.permute.xlu0 %276
        %278 = vrot.lane.b32.xlu0 %v223, 8
        %v279 = vpop.permute.xlu0 %278
        %vm288 = vcmask 31744
        %v289 = vsel %vm288, %v200, %v233
        %v290 = vsel %vm288, %v201, %v235
        %v291 = vsel %vm288, %v202, %v237
        %v292 = vsel %vm288, %v203, %v239
        %v293 = vsel %vm288, %v204, %v241
        %v294 = vsel %vm288, %v205, %v243
        %v295 = vsel %vm288, %v206, %v245
        %v296 = vsel %vm288, %v207, %v247
        %vm297 = vcmask 64512
        %v298 = vsel %vm297, %v289, %v265
        %v299 = vsel %vm297, %v290, %v267
        %v300 = vsel %vm297, %v291, %v269
        %v301 = vsel %vm297, %v292, %v271
        %v302 = vsel %vm297, %v293, %v273
        %v303 = vsel %vm297, %v294, %v275
        %v304 = vsel %vm297, %v295, %v277
        %v305 = vsel %vm297, %v296, %v279
        %s306 = smul.u32 %s196, 256
        %s307 = scalar_lea.vmem [#allocation2], %s306
        %vm308 = vcmask 97280
        %309 = vst.msk [vmem:[%s307] sm:$0xff] %vm308, %v298
        %310 = vst.msk [vmem:[%s307 + $0x8] sm:$0xff] %vm308, %v299
        %311 = vst.msk [vmem:[%s307 + $0x10] sm:$0xff] %vm308, %v300
        %312 = vst.msk [vmem:[%s307 + $0x18] sm:$0xff] %vm308, %v301
        %313 = vst.msk [vmem:[%s307 + $0x20] sm:$0xff] %vm308, %v302
        %314 = vst.msk [vmem:[%s307 + $0x28] sm:$0xff] %vm308, %v303
        %315 = vst.msk [vmem:[%s307 + $0x30] sm:$0xff] %vm308, %v304
        %316 = vst.msk [vmem:[%s307 + $0x38] sm:$0xff] %vm308, %v305
        %s317 = sadd.s32 %s197, 1
        %s318 = smul.u32 %s317, 24
        %s319 = scalar_lea.vmem %s182, %s318
        %v320 = vld [vmem:[%s319] sm:$0xff]
        %v321 = vld [vmem:[%s319 + $0x8] sm:$0xff]
        %v322 = vld [vmem:[%s319 + $0x18] sm:$0xff]
        %v323 = vld [vmem:[%s319 + $0x20] sm:$0xff]
        %v324 = vld [vmem:[%s319 + $0x30] sm:$0xff]
        %v325 = vld [vmem:[%s319 + $0x38] sm:$0xff]
        %v326 = vld [vmem:[%s319 + $0x48] sm:$0xff]
        %v327 = vld [vmem:[%s319 + $0x50] sm:$0xff]
        %v328 = vld [vmem:[%s319 + $0x1] sm:$0xff]
        %v329 = vld [vmem:[%s319 + $0x9] sm:$0xff]
        %v330 = vld [vmem:[%s319 + $0x19] sm:$0xff]
        %v331 = vld [vmem:[%s319 + $0x21] sm:$0xff]
        %v332 = vld [vmem:[%s319 + $0x31] sm:$0xff]
        %v333 = vld [vmem:[%s319 + $0x39] sm:$0xff]
        %v334 = vld [vmem:[%s319 + $0x49] sm:$0xff]
        %v335 = vld [vmem:[%s319 + $0x51] sm:$0xff]
        %v336 = vld [vmem:[%s319 + $0x2] sm:$0xff]
        %v337 = vld [vmem:[%s319 + $0xa] sm:$0xff]
        %v338 = vld [vmem:[%s319 + $0x1a] sm:$0xff]
        %v339 = vld [vmem:[%s319 + $0x22] sm:$0xff]
        %v340 = vld [vmem:[%s319 + $0x32] sm:$0xff]
        %v341 = vld [vmem:[%s319 + $0x3a] sm:$0xff]
        %v342 = vld [vmem:[%s319 + $0x4a] sm:$0xff]
        %v343 = vld [vmem:[%s319 + $0x52] sm:$0xff]
        %352 = vrot.lane.b32.xlu0 %v328, 4
        %v353 = vpop.permute.xlu0 %352
        %354 = vrot.lane.b32.xlu0 %v329, 4
        %v355 = vpop.permute.xlu0 %354
        %356 = vrot.lane.b32.xlu0 %v330, 4
        %v357 = vpop.permute.xlu0 %356
        %358 = vrot.lane.b32.xlu0 %v331, 4
        %v359 = vpop.permute.xlu0 %358
        %360 = vrot.lane.b32.xlu0 %v332, 4
        %v361 = vpop.permute.xlu0 %360
        %362 = vrot.lane.b32.xlu0 %v333, 4
        %v363 = vpop.permute.xlu0 %362
        %364 = vrot.lane.b32.xlu0 %v334, 4
        %v365 = vpop.permute.xlu0 %364
        %366 = vrot.lane.b32.xlu0 %v335, 4
        %v367 = vpop.permute.xlu0 %366
        %384 = vrot.lane.b32.xlu0 %v336, 8
        %v385 = vpop.permute.xlu0 %384
        %386 = vrot.lane.b32.xlu0 %v337, 8
        %v387 = vpop.permute.xlu0 %386
        %388 = vrot.lane.b32.xlu0 %v338, 8
        %v389 = vpop.permute.xlu0 %388
        %390 = vrot.lane.b32.xlu0 %v339, 8
        %v391 = vpop.permute.xlu0 %390
        %392 = vrot.lane.b32.xlu0 %v340, 8
        %v393 = vpop.permute.xlu0 %392
        %394 = vrot.lane.b32.xlu0 %v341, 8
        %v395 = vpop.permute.xlu0 %394
        %396 = vrot.lane.b32.xlu0 %v342, 8
        %v397 = vpop.permute.xlu0 %396
        %398 = vrot.lane.b32.xlu0 %v343, 8
        %v399 = vpop.permute.xlu0 %398
        %v408 = vsel %vm288, %v320, %v353
        %v409 = vsel %vm288, %v321, %v355
        %v410 = vsel %vm288, %v322, %v357
        %v411 = vsel %vm288, %v323, %v359
        %v412 = vsel %vm288, %v324, %v361
        %v413 = vsel %vm288, %v325, %v363
        %v414 = vsel %vm288, %v326, %v365
        %v415 = vsel %vm288, %v327, %v367
        %v416 = vsel %vm297, %v408, %v385
        %v417 = vsel %vm297, %v409, %v387
        %v418 = vsel %vm297, %v410, %v389
        %v419 = vsel %vm297, %v411, %v391
        %v420 = vsel %vm297, %v412, %v393
        %v421 = vsel %vm297, %v413, %v395
        %v422 = vsel %vm297, %v414, %v397
        %v423 = vsel %vm297, %v415, %v399
        %432 = vrot.lane.b32.xlu0 %v416, 12
        %v433 = vpop.permute.xlu0 %432
        %434 = vrot.lane.b32.xlu0 %v417, 12
        %v435 = vpop.permute.xlu0 %434
        %436 = vrot.lane.b32.xlu0 %v418, 12
        %v437 = vpop.permute.xlu0 %436
        %438 = vrot.lane.b32.xlu0 %v419, 12
        %v439 = vpop.permute.xlu0 %438
        %440 = vrot.lane.b32.xlu0 %v420, 12
        %v441 = vpop.permute.xlu0 %440
        %442 = vrot.lane.b32.xlu0 %v421, 12
        %v443 = vpop.permute.xlu0 %442
        %444 = vrot.lane.b32.xlu0 %v422, 12
        %v445 = vpop.permute.xlu0 %444
        %446 = vrot.lane.b32.xlu0 %v423, 12
        %v447 = vpop.permute.xlu0 %446
        %vm456 = vcmask 195680
        %457 = vst.msk [vmem:[%s307] sm:$0xff] %vm456, %v433
        %458 = vst.msk [vmem:[%s307 + $0x8] sm:$0xff] %vm456, %v435
        %459 = vst.msk [vmem:[%s307 + $0x10] sm:$0xff] %vm456, %v437
        %460 = vst.msk [vmem:[%s307 + $0x18] sm:$0xff] %vm456, %v439
        %461 = vst.msk [vmem:[%s307 + $0x20] sm:$0xff] %vm456, %v441
        %462 = vst.msk [vmem:[%s307 + $0x28] sm:$0xff] %vm456, %v443
        %463 = vst.msk [vmem:[%s307 + $0x30] sm:$0xff] %vm456, %v445
        %464 = vst.msk [vmem:[%s307 + $0x38] sm:$0xff] %vm456, %v447
        %s465 = sadd.s32 %s197, 2
        %s466 = smul.u32 %s465, 24
        %s467 = scalar_lea.vmem %s182, %s466
        %v468 = vld [vmem:[%s467] sm:$0xff]
        %v469 = vld [vmem:[%s467 + $0x8] sm:$0xff]
        %v470 = vld [vmem:[%s467 + $0x18] sm:$0xff]
        %v471 = vld [vmem:[%s467 + $0x20] sm:$0xff]
        %v472 = vld [vmem:[%s467 + $0x30] sm:$0xff]
        %v473 = vld [vmem:[%s467 + $0x38] sm:$0xff]
        %v474 = vld [vmem:[%s467 + $0x48] sm:$0xff]
        %v475 = vld [vmem:[%s467 + $0x50] sm:$0xff]
        %v476 = vld [vmem:[%s467 + $0x1] sm:$0xff]
        %v477 = vld [vmem:[%s467 + $0x9] sm:$0xff]
        %v478 = vld [vmem:[%s467 + $0x19] sm:$0xff]
        %v479 = vld [vmem:[%s467 + $0x21] sm:$0xff]
        %v480 = vld [vmem:[%s467 + $0x31] sm:$0xff]
        %v481 = vld [vmem:[%s467 + $0x39] sm:$0xff]
        %v482 = vld [vmem:[%s467 + $0x49] sm:$0xff]
        %v483 = vld [vmem:[%s467 + $0x51] sm:$0xff]
        %v484 = vld [vmem:[%s467 + $0x2] sm:$0xff]
        %v485 = vld [vmem:[%s467 + $0xa] sm:$0xff]
        %v486 = vld [vmem:[%s467 + $0x1a] sm:$0xff]
        %v487 = vld [vmem:[%s467 + $0x22] sm:$0xff]
        %v488 = vld [vmem:[%s467 + $0x32] sm:$0xff]
        %v489 = vld [vmem:[%s467 + $0x3a] sm:$0xff]
        %v490 = vld [vmem:[%s467 + $0x4a] sm:$0xff]
        %v491 = vld [vmem:[%s467 + $0x52] sm:$0xff]
        %500 = vrot.lane.b32.xlu0 %v476, 4
        %v501 = vpop.permute.xlu0 %500
        %502 = vrot.lane.b32.xlu0 %v477, 4
        %v503 = vpop.permute.xlu0 %502
        %504 = vrot.lane.b32.xlu0 %v478, 4
        %v505 = vpop.permute.xlu0 %504
        %506 = vrot.lane.b32.xlu0 %v479, 4
        %v507 = vpop.permute.xlu0 %506
        %508 = vrot.lane.b32.xlu0 %v480, 4
        %v509 = vpop.permute.xlu0 %508
        %510 = vrot.lane.b32.xlu0 %v481, 4
        %v511 = vpop.permute.xlu0 %510
        %512 = vrot.lane.b32.xlu0 %v482, 4
        %v513 = vpop.permute.xlu0 %512
        %514 = vrot.lane.b32.xlu0 %v483, 4
        %v515 = vpop.permute.xlu0 %514
        %532 = vrot.lane.b32.xlu0 %v484, 8
        %v533 = vpop.permute.xlu0 %532
        %534 = vrot.lane.b32.xlu0 %v485, 8
        %v535 = vpop.permute.xlu0 %534
        %536 = vrot.lane.b32.xlu0 %v486, 8
        %v537 = vpop.permute.xlu0 %536
        %538 = vrot.lane.b32.xlu0 %v487, 8
        %v539 = vpop.permute.xlu0 %538
        %540 = vrot.lane.b32.xlu0 %v488, 8
        %v541 = vpop.permute.xlu0 %540
        %542 = vrot.lane.b32.xlu0 %v489, 8
        %v543 = vpop.permute.xlu0 %542
        %544 = vrot.lane.b32.xlu0 %v490, 8
        %v545 = vpop.permute.xlu0 %544
        %546 = vrot.lane.b32.xlu0 %v491, 8
        %v547 = vpop.permute.xlu0 %546
        %v556 = vsel %vm288, %v468, %v501
        %v557 = vsel %vm288, %v469, %v503
        %v558 = vsel %vm288, %v470, %v505
        %v559 = vsel %vm288, %v471, %v507
        %v560 = vsel %vm288, %v472, %v509
        %v561 = vsel %vm288, %v473, %v511
        %v562 = vsel %vm288, %v474, %v513
        %v563 = vsel %vm288, %v475, %v515
        %v564 = vsel %vm297, %v556, %v533
        %v565 = vsel %vm297, %v557, %v535
        %v566 = vsel %vm297, %v558, %v537
        %v567 = vsel %vm297, %v559, %v539
        %v568 = vsel %vm297, %v560, %v541
        %v569 = vsel %vm297, %v561, %v543
        %v570 = vsel %vm297, %v562, %v545
        %v571 = vsel %vm297, %v563, %v547
        %v572 = vsel %vm308, %v564, 0.0
        %v573 = vsel %vm308, %v565, 0.0
        %v574 = vsel %vm308, %v566, 0.0
        %v575 = vsel %vm308, %v567, 0.0
        %v576 = vsel %vm308, %v568, 0.0
        %v577 = vsel %vm308, %v569, 0.0
        %v578 = vsel %vm308, %v570, 0.0
        %v579 = vsel %vm308, %v571, 0.0
        %588 = vrot.lane.b32.xlu0 %v572, 24
        %v589 = vpop.permute.xlu0 %588
        %590 = vrot.lane.b32.xlu0 %v573, 24
        %v591 = vpop.permute.xlu0 %590
        %592 = vrot.lane.b32.xlu0 %v574, 24
        %v593 = vpop.permute.xlu0 %592
        %594 = vrot.lane.b32.xlu0 %v575, 24
        %v595 = vpop.permute.xlu0 %594
        %596 = vrot.lane.b32.xlu0 %v576, 24
        %v597 = vpop.permute.xlu0 %596
        %598 = vrot.lane.b32.xlu0 %v577, 24
        %v599 = vpop.permute.xlu0 %598
        %600 = vrot.lane.b32.xlu0 %v578, 24
        %v601 = vpop.permute.xlu0 %600
        %602 = vrot.lane.b32.xlu0 %v579, 24
        %v603 = vpop.permute.xlu0 %602
        %vm612 = vcmask 1047744
        %613 = vst.msk [vmem:[%s307] sm:$0xff] %vm612, %v589
        %614 = vst.msk [vmem:[%s307 + $0x8] sm:$0xff] %vm612, %v591
        %615 = vst.msk [vmem:[%s307 + $0x10] sm:$0xff] %vm612, %v593
        %616 = vst.msk [vmem:[%s307 + $0x18] sm:$0xff] %vm612, %v595
        %617 = vst.msk [vmem:[%s307 + $0x20] sm:$0xff] %vm612, %v597
        %618 = vst.msk [vmem:[%s307 + $0x28] sm:$0xff] %vm612, %v599
        %619 = vst.msk [vmem:[%s307 + $0x30] sm:$0xff] %vm612, %v601
        %620 = vst.msk [vmem:[%s307 + $0x38] sm:$0xff] %vm612, %v603
        %s621 = sadd.s32 %s197, 4
        %s622 = smul.u32 %s621, 24
        %s623 = scalar_lea.vmem %s182, %s622
        %v624 = vld [vmem:[%s623] sm:$0xff]
        %v625 = vld [vmem:[%s623 + $0x8] sm:$0xff]
        %v626 = vld [vmem:[%s623 + $0x18] sm:$0xff]
        %v627 = vld [vmem:[%s623 + $0x20] sm:$0xff]
        %v628 = vld [vmem:[%s623 + $0x30] sm:$0xff]
        %v629 = vld [vmem:[%s623 + $0x38] sm:$0xff]
        %v630 = vld [vmem:[%s623 + $0x48] sm:$0xff]
        %v631 = vld [vmem:[%s623 + $0x50] sm:$0xff]
        %v632 = vld [vmem:[%s623 + $0x1] sm:$0xff]
        %v633 = vld [vmem:[%s623 + $0x9] sm:$0xff]
        %v634 = vld [vmem:[%s623 + $0x19] sm:$0xff]
        %v635 = vld [vmem:[%s623 + $0x21] sm:$0xff]
        %v636 = vld [vmem:[%s623 + $0x31] sm:$0xff]
        %v637 = vld [vmem:[%s623 + $0x39] sm:$0xff]
        %v638 = vld [vmem:[%s623 + $0x49] sm:$0xff]
        %v639 = vld [vmem:[%s623 + $0x51] sm:$0xff]
        %v640 = vld [vmem:[%s623 + $0x2] sm:$0xff]
        %v641 = vld [vmem:[%s623 + $0xa] sm:$0xff]
        %v642 = vld [vmem:[%s623 + $0x1a] sm:$0xff]
        %v643 = vld [vmem:[%s623 + $0x22] sm:$0xff]
        %v644 = vld [vmem:[%s623 + $0x32] sm:$0xff]
        %v645 = vld [vmem:[%s623 + $0x3a] sm:$0xff]
        %v646 = vld [vmem:[%s623 + $0x4a] sm:$0xff]
        %v647 = vld [vmem:[%s623 + $0x52] sm:$0xff]
        %656 = vrot.lane.b32.xlu0 %v632, 4
        %v657 = vpop.permute.xlu0 %656
        %658 = vrot.lane.b32.xlu0 %v633, 4
        %v659 = vpop.permute.xlu0 %658
        %660 = vrot.lane.b32.xlu0 %v634, 4
        %v661 = vpop.permute.xlu0 %660
        %662 = vrot.lane.b32.xlu0 %v635, 4
        %v663 = vpop.permute.xlu0 %662
        %664 = vrot.lane.b32.xlu0 %v636, 4
        %v665 = vpop.permute.xlu0 %664
        %666 = vrot.lane.b32.xlu0 %v637, 4
        %v667 = vpop.permute.xlu0 %666
        %668 = vrot.lane.b32.xlu0 %v638, 4
        %v669 = vpop.permute.xlu0 %668
        %670 = vrot.lane.b32.xlu0 %v639, 4
        %v671 = vpop.permute.xlu0 %670
        %688 = vrot.lane.b32.xlu0 %v640, 8
        %v689 = vpop.permute.xlu0 %688
        %690 = vrot.lane.b32.xlu0 %v641, 8
        %v691 = vpop.permute.xlu0 %690
        %692 = vrot.lane.b32.xlu0 %v642, 8
        %v693 = vpop.permute.xlu0 %692
        %694 = vrot.lane.b32.xlu0 %v643, 8
        %v695 = vpop.permute.xlu0 %694
        %696 = vrot.lane.b32.xlu0 %v644, 8
        %v697 = vpop.permute.xlu0 %696
        %698 = vrot.lane.b32.xlu0 %v645, 8
        %v699 = vpop.permute.xlu0 %698
        %700 = vrot.lane.b32.xlu0 %v646, 8
        %v701 = vpop.permute.xlu0 %700
        %702 = vrot.lane.b32.xlu0 %v647, 8
        %v703 = vpop.permute.xlu0 %702
        %v712 = vsel %vm288, %v624, %v657
        %v713 = vsel %vm288, %v625, %v659
        %v714 = vsel %vm288, %v626, %v661
        %v715 = vsel %vm288, %v627, %v663
        %v716 = vsel %vm288, %v628, %v665
        %v717 = vsel %vm288, %v629, %v667
        %v718 = vsel %vm288, %v630, %v669
        %v719 = vsel %vm288, %v631, %v671
        %v720 = vsel %vm297, %v712, %v689
        %v721 = vsel %vm297, %v713, %v691
        %v722 = vsel %vm297, %v714, %v693
        %v723 = vsel %vm297, %v715, %v695
        %v724 = vsel %vm297, %v716, %v697
        %v725 = vsel %vm297, %v717, %v699
        %v726 = vsel %vm297, %v718, %v701
        %v727 = vsel %vm297, %v719, %v703
        %728 = vst.msk [vmem:[%s307 + $0x40] sm:$0xff] %vm308, %v720
        %729 = vst.msk [vmem:[%s307 + $0x48] sm:$0xff] %vm308, %v721
        %730 = vst.msk [vmem:[%s307 + $0x50] sm:$0xff] %vm308, %v722
        %731 = vst.msk [vmem:[%s307 + $0x58] sm:$0xff] %vm308, %v723
        %732 = vst.msk [vmem:[%s307 + $0x60] sm:$0xff] %vm308, %v724
        %733 = vst.msk [vmem:[%s307 + $0x68] sm:$0xff] %vm308, %v725
        %734 = vst.msk [vmem:[%s307 + $0x70] sm:$0xff] %vm308, %v726
        %735 = vst.msk [vmem:[%s307 + $0x78] sm:$0xff] %vm308, %v727
        %s736 = sadd.s32 %s197, 5
        %s737 = smul.u32 %s736, 24
        %s738 = scalar_lea.vmem %s182, %s737
        %v739 = vld [vmem:[%s738] sm:$0xff]
        %v740 = vld [vmem:[%s738 + $0x8] sm:$0xff]
        %v741 = vld [vmem:[%s738 + $0x18] sm:$0xff]
        %v742 = vld [vmem:[%s738 + $0x20] sm:$0xff]
        %v743 = vld [vmem:[%s738 + $0x30] sm:$0xff]
        %v744 = vld [vmem:[%s738 + $0x38] sm:$0xff]
        %v745 = vld [vmem:[%s738 + $0x48] sm:$0xff]
        %v746 = vld [vmem:[%s738 + $0x50] sm:$0xff]
        %v747 = vld [vmem:[%s738 + $0x1] sm:$0xff]
        %v748 = vld [vmem:[%s738 + $0x9] sm:$0xff]
        %v749 = vld [vmem:[%s738 + $0x19] sm:$0xff]
        %v750 = vld [vmem:[%s738 + $0x21] sm:$0xff]
        %v751 = vld [vmem:[%s738 + $0x31] sm:$0xff]
        %v752 = vld [vmem:[%s738 + $0x39] sm:$0xff]
        %v753 = vld [vmem:[%s738 + $0x49] sm:$0xff]
        %v754 = vld [vmem:[%s738 + $0x51] sm:$0xff]
        %v755 = vld [vmem:[%s738 + $0x2] sm:$0xff]
        %v756 = vld [vmem:[%s738 + $0xa] sm:$0xff]
        %v757 = vld [vmem:[%s738 + $0x1a] sm:$0xff]
        %v758 = vld [vmem:[%s738 + $0x22] sm:$0xff]
        %v759 = vld [vmem:[%s738 + $0x32] sm:$0xff]
        %v760 = vld [vmem:[%s738 + $0x3a] sm:$0xff]
        %v761 = vld [vmem:[%s738 + $0x4a] sm:$0xff]
        %v762 = vld [vmem:[%s738 + $0x52] sm:$0xff]
        %771 = vrot.lane.b32.xlu0 %v747, 4
        %v772 = vpop.permute.xlu0 %771
        %773 = vrot.lane.b32.xlu0 %v748, 4
        %v774 = vpop.permute.xlu0 %773
        %775 = vrot.lane.b32.xlu0 %v749, 4
        %v776 = vpop.permute.xlu0 %775
        %777 = vrot.lane.b32.xlu0 %v750, 4
        %v778 = vpop.permute.xlu0 %777
        %779 = vrot.lane.b32.xlu0 %v751, 4
        %v780 = vpop.permute.xlu0 %779
        %781 = vrot.lane.b32.xlu0 %v752, 4
        %v782 = vpop.permute.xlu0 %781
        %783 = vrot.lane.b32.xlu0 %v753, 4
        %v784 = vpop.permute.xlu0 %783
        %785 = vrot.lane.b32.xlu0 %v754, 4
        %v786 = vpop.permute.xlu0 %785
        %803 = vrot.lane.b32.xlu0 %v755, 8
        %v804 = vpop.permute.xlu0 %803
        %805 = vrot.lane.b32.xlu0 %v756, 8
        %v806 = vpop.permute.xlu0 %805
        %807 = vrot.lane.b32.xlu0 %v757, 8
        %v808 = vpop.permute.xlu0 %807
        %809 = vrot.lane.b32.xlu0 %v758, 8
        %v810 = vpop.permute.xlu0 %809
        %811 = vrot.lane.b32.xlu0 %v759, 8
        %v812 = vpop.permute.xlu0 %811
        %813 = vrot.lane.b32.xlu0 %v760, 8
        %v814 = vpop.permute.xlu0 %813
        %815 = vrot.lane.b32.xlu0 %v761, 8
        %v816 = vpop.permute.xlu0 %815
        %817 = vrot.lane.b32.xlu0 %v762, 8
        %v818 = vpop.permute.xlu0 %817
        %v827 = vsel %vm288, %v739, %v772
        %v828 = vsel %vm288, %v740, %v774
        %v829 = vsel %vm288, %v741, %v776
        %v830 = vsel %vm288, %v742, %v778
        %v831 = vsel %vm288, %v743, %v780
        %v832 = vsel %vm288, %v744, %v782
        %v833 = vsel %vm288, %v745, %v784
        %v834 = vsel %vm288, %v746, %v786
        %v835 = vsel %vm297, %v827, %v804
        %v836 = vsel %vm297, %v828, %v806
        %v837 = vsel %vm297, %v829, %v808
        %v838 = vsel %vm297, %v830, %v810
        %v839 = vsel %vm297, %v831, %v812
        %v840 = vsel %vm297, %v832, %v814
        %v841 = vsel %vm297, %v833, %v816
        %v842 = vsel %vm297, %v834, %v818
        %851 = vrot.lane.b32.xlu0 %v835, 12
        %v852 = vpop.permute.xlu0 %851
        %853 = vrot.lane.b32.xlu0 %v836, 12
        %v854 = vpop.permute.xlu0 %853
        %855 = vrot.lane.b32.xlu0 %v837, 12
        %v856 = vpop.permute.xlu0 %855
        %857 = vrot.lane.b32.xlu0 %v838, 12
        %v858 = vpop.permute.xlu0 %857
        %859 = vrot.lane.b32.xlu0 %v839, 12
        %v860 = vpop.permute.xlu0 %859
        %861 = vrot.lane.b32.xlu0 %v840, 12
        %v862 = vpop.permute.xlu0 %861
        %863 = vrot.lane.b32.xlu0 %v841, 12
        %v864 = vpop.permute.xlu0 %863
        %865 = vrot.lane.b32.xlu0 %v842, 12
        %v866 = vpop.permute.xlu0 %865
        %875 = vst.msk [vmem:[%s307 + $0x40] sm:$0xff] %vm456, %v852
        %876 = vst.msk [vmem:[%s307 + $0x48] sm:$0xff] %vm456, %v854
        %877 = vst.msk [vmem:[%s307 + $0x50] sm:$0xff] %vm456, %v856
        %878 = vst.msk [vmem:[%s307 + $0x58] sm:$0xff] %vm456, %v858
        %879 = vst.msk [vmem:[%s307 + $0x60] sm:$0xff] %vm456, %v860
        %880 = vst.msk [vmem:[%s307 + $0x68] sm:$0xff] %vm456, %v862
        %881 = vst.msk [vmem:[%s307 + $0x70] sm:$0xff] %vm456, %v864
        %882 = vst.msk [vmem:[%s307 + $0x78] sm:$0xff] %vm456, %v866
        %s883 = sadd.s32 %s197, 6
        %s884 = smul.u32 %s883, 24
        %s885 = scalar_lea.vmem %s182, %s884
        %v886 = vld [vmem:[%s885] sm:$0xff]
        %v887 = vld [vmem:[%s885 + $0x8] sm:$0xff]
        %v888 = vld [vmem:[%s885 + $0x18] sm:$0xff]
        %v889 = vld [vmem:[%s885 + $0x20] sm:$0xff]
        %v890 = vld [vmem:[%s885 + $0x30] sm:$0xff]
        %v891 = vld [vmem:[%s885 + $0x38] sm:$0xff]
        %v892 = vld [vmem:[%s885 + $0x48] sm:$0xff]
        %v893 = vld [vmem:[%s885 + $0x50] sm:$0xff]
        %v894 = vld [vmem:[%s885 + $0x1] sm:$0xff]
        %v895 = vld [vmem:[%s885 + $0x9] sm:$0xff]
        %v896 = vld [vmem:[%s885 + $0x19] sm:$0xff]
        %v897 = vld [vmem:[%s885 + $0x21] sm:$0xff]
        %v898 = vld [vmem:[%s885 + $0x31] sm:$0xff]
        %v899 = vld [vmem:[%s885 + $0x39] sm:$0xff]
        %v900 = vld [vmem:[%s885 + $0x49] sm:$0xff]
        %v901 = vld [vmem:[%s885 + $0x51] sm:$0xff]
        %v902 = vld [vmem:[%s885 + $0x2] sm:$0xff]
        %v903 = vld [vmem:[%s885 + $0xa] sm:$0xff]
        %v904 = vld [vmem:[%s885 + $0x1a] sm:$0xff]
        %v905 = vld [vmem:[%s885 + $0x22] sm:$0xff]
        %v906 = vld [vmem:[%s885 + $0x32] sm:$0xff]
        %v907 = vld [vmem:[%s885 + $0x3a] sm:$0xff]
        %v908 = vld [vmem:[%s885 + $0x4a] sm:$0xff]
        %v909 = vld [vmem:[%s885 + $0x52] sm:$0xff]
        %918 = vrot.lane.b32.xlu0 %v894, 4
        %v919 = vpop.permute.xlu0 %918
        %920 = vrot.lane.b32.xlu0 %v895, 4
        %v921 = vpop.permute.xlu0 %920
        %922 = vrot.lane.b32.xlu0 %v896, 4
        %v923 = vpop.permute.xlu0 %922
        %924 = vrot.lane.b32.xlu0 %v897, 4
        %v925 = vpop.permute.xlu0 %924
        %926 = vrot.lane.b32.xlu0 %v898, 4
        %v927 = vpop.permute.xlu0 %926
        %928 = vrot.lane.b32.xlu0 %v899, 4
        %v929 = vpop.permute.xlu0 %928
        %930 = vrot.lane.b32.xlu0 %v900, 4
        %v931 = vpop.permute.xlu0 %930
        %932 = vrot.lane.b32.xlu0 %v901, 4
        %v933 = vpop.permute.xlu0 %932
        %950 = vrot.lane.b32.xlu0 %v902, 8
        %v951 = vpop.permute.xlu0 %950
        %952 = vrot.lane.b32.xlu0 %v903, 8
        %v953 = vpop.permute.xlu0 %952
        %954 = vrot.lane.b32.xlu0 %v904, 8
        %v955 = vpop.permute.xlu0 %954
        %956 = vrot.lane.b32.xlu0 %v905, 8
        %v957 = vpop.permute.xlu0 %956
        %958 = vrot.lane.b32.xlu0 %v906, 8
        %v959 = vpop.permute.xlu0 %958
        %960 = vrot.lane.b32.xlu0 %v907, 8
        %v961 = vpop.permute.xlu0 %960
        %962 = vrot.lane.b32.xlu0 %v908, 8
        %v963 = vpop.permute.xlu0 %962
        %964 = vrot.lane.b32.xlu0 %v909, 8
        %v965 = vpop.permute.xlu0 %964
        %v974 = vsel %vm288, %v886, %v919
        %v975 = vsel %vm288, %v887, %v921
        %v976 = vsel %vm288, %v888, %v923
        %v977 = vsel %vm288, %v889, %v925
        %v978 = vsel %vm288, %v890, %v927
        %v979 = vsel %vm288, %v891, %v929
        %v980 = vsel %vm288, %v892, %v931
        %v981 = vsel %vm288, %v893, %v933
        %v982 = vsel %vm297, %v974, %v951
        %v983 = vsel %vm297, %v975, %v953
        %v984 = vsel %vm297, %v976, %v955
        %v985 = vsel %vm297, %v977, %v957
        %v986 = vsel %vm297, %v978, %v959
        %v987 = vsel %vm297, %v979, %v961
        %v988 = vsel %vm297, %v980, %v963
        %v989 = vsel %vm297, %v981, %v965
        %v990 = vsel %vm308, %v982, 0.0
        %v991 = vsel %vm308, %v983, 0.0
        %v992 = vsel %vm308, %v984, 0.0
        %v993 = vsel %vm308, %v985, 0.0
        %v994 = vsel %vm308, %v986, 0.0
        %v995 = vsel %vm308, %v987, 0.0
        %v996 = vsel %vm308, %v988, 0.0
        %v997 = vsel %vm308, %v989, 0.0
        %1006 = vrot.lane.b32.xlu0 %v990, 24
        %v1007 = vpop.permute.xlu0 %1006
        %1008 = vrot.lane.b32.xlu0 %v991, 24
        %v1009 = vpop.permute.xlu0 %1008
        %1010 = vrot.lane.b32.xlu0 %v992, 24
        %v1011 = vpop.permute.xlu0 %1010
        %1012 = vrot.lane.b32.xlu0 %v993, 24
        %v1013 = vpop.permute.xlu0 %1012
        %1014 = vrot.lane.b32.xlu0 %v994, 24
        %v1015 = vpop.permute.xlu0 %1014
        %1016 = vrot.lane.b32.xlu0 %v995, 24
        %v1017 = vpop.permute.xlu0 %1016
        %1018 = vrot.lane.b32.xlu0 %v996, 24
        %v1019 = vpop.permute.xlu0 %1018
        %1020 = vrot.lane.b32.xlu0 %v997, 24
        %v1021 = vpop.permute.xlu0 %1020
        %1030 = vst.msk [vmem:[%s307 + $0x40] sm:$0xff] %vm612, %v1007
        %1031 = vst.msk [vmem:[%s307 + $0x48] sm:$0xff] %vm612, %v1009
        %1032 = vst.msk [vmem:[%s307 + $0x50] sm:$0xff] %vm612, %v1011
        %1033 = vst.msk [vmem:[%s307 + $0x58] sm:$0xff] %vm612, %v1013
        %1034 = vst.msk [vmem:[%s307 + $0x60] sm:$0xff] %vm612, %v1015
        %1035 = vst.msk [vmem:[%s307 + $0x68] sm:$0xff] %vm612, %v1017
        %1036 = vst.msk [vmem:[%s307 + $0x70] sm:$0xff] %vm612, %v1019
        %1037 = vst.msk [vmem:[%s307 + $0x78] sm:$0xff] %vm612, %v1021
        %s1038 = sadd.s32 %s197, 8
        %s1039 = smul.u32 %s1038, 24
        %s1040 = scalar_lea.vmem %s182, %s1039
        %v1041 = vld [vmem:[%s1040] sm:$0xff]
        %v1042 = vld [vmem:[%s1040 + $0x8] sm:$0xff]
        %v1043 = vld [vmem:[%s1040 + $0x18] sm:$0xff]
        %v1044 = vld [vmem:[%s1040 + $0x20] sm:$0xff]
        %v1045 = vld [vmem:[%s1040 + $0x30] sm:$0xff]
        %v1046 = vld [vmem:[%s1040 + $0x38] sm:$0xff]
        %v1047 = vld [vmem:[%s1040 + $0x48] sm:$0xff]
        %v1048 = vld [vmem:[%s1040 + $0x50] sm:$0xff]
        %v1049 = vld [vmem:[%s1040 + $0x1] sm:$0xff]
        %v1050 = vld [vmem:[%s1040 + $0x9] sm:$0xff]
        %v1051 = vld [vmem:[%s1040 + $0x19] sm:$0xff]
        %v1052 = vld [vmem:[%s1040 + $0x21] sm:$0xff]
        %v1053 = vld [vmem:[%s1040 + $0x31] sm:$0xff]
        %v1054 = vld [vmem:[%s1040 + $0x39] sm:$0xff]
        %v1055 = vld [vmem:[%s1040 + $0x49] sm:$0xff]
        %v1056 = vld [vmem:[%s1040 + $0x51] sm:$0xff]
        %v1057 = vld [vmem:[%s1040 + $0x2] sm:$0xff]
        %v1058 = vld [vmem:[%s1040 + $0xa] sm:$0xff]
        %v1059 = vld [vmem:[%s1040 + $0x1a] sm:$0xff]
        %v1060 = vld [vmem:[%s1040 + $0x22] sm:$0xff]
        %v1061 = vld [vmem:[%s1040 + $0x32] sm:$0xff]
        %v1062 = vld [vmem:[%s1040 + $0x3a] sm:$0xff]
        %v1063 = vld [vmem:[%s1040 + $0x4a] sm:$0xff]
        %v1064 = vld [vmem:[%s1040 + $0x52] sm:$0xff]
        %1073 = vrot.lane.b32.xlu0 %v1049, 4
        %v1074 = vpop.permute.xlu0 %1073
        %1075 = vrot.lane.b32.xlu0 %v1050, 4
        %v1076 = vpop.permute.xlu0 %1075
        %1077 = vrot.lane.b32.xlu0 %v1051, 4
        %v1078 = vpop.permute.xlu0 %1077
        %1079 = vrot.lane.b32.xlu0 %v1052, 4
        %v1080 = vpop.permute.xlu0 %1079
        %1081 = vrot.lane.b32.xlu0 %v1053, 4
        %v1082 = vpop.permute.xlu0 %1081
        %1083 = vrot.lane.b32.xlu0 %v1054, 4
        %v1084 = vpop.permute.xlu0 %1083
        %1085 = vrot.lane.b32.xlu0 %v1055, 4
        %v1086 = vpop.permute.xlu0 %1085
        %1087 = vrot.lane.b32.xlu0 %v1056, 4
        %v1088 = vpop.permute.xlu0 %1087
        %1105 = vrot.lane.b32.xlu0 %v1057, 8
        %v1106 = vpop.permute.xlu0 %1105
        %1107 = vrot.lane.b32.xlu0 %v1058, 8
        %v1108 = vpop.permute.xlu0 %1107
        %1109 = vrot.lane.b32.xlu0 %v1059, 8
        %v1110 = vpop.permute.xlu0 %1109
        %1111 = vrot.lane.b32.xlu0 %v1060, 8
        %v1112 = vpop.permute.xlu0 %1111
        %1113 = vrot.lane.b32.xlu0 %v1061, 8
        %v1114 = vpop.permute.xlu0 %1113
        %1115 = vrot.lane.b32.xlu0 %v1062, 8
        %v1116 = vpop.permute.xlu0 %1115
        %1117 = vrot.lane.b32.xlu0 %v1063, 8
        %v1118 = vpop.permute.xlu0 %1117
        %1119 = vrot.lane.b32.xlu0 %v1064, 8
        %v1120 = vpop.permute.xlu0 %1119
        %v1129 = vsel %vm288, %v1041, %v1074
        %v1130 = vsel %vm288, %v1042, %v1076
        %v1131 = vsel %vm288, %v1043, %v1078
        %v1132 = vsel %vm288, %v1044, %v1080
        %v1133 = vsel %vm288, %v1045, %v1082
        %v1134 = vsel %vm288, %v1046, %v1084
        %v1135 = vsel %vm288, %v1047, %v1086
        %v1136 = vsel %vm288, %v1048, %v1088
        %v1137 = vsel %vm297, %v1129, %v1106
        %v1138 = vsel %vm297, %v1130, %v1108
        %v1139 = vsel %vm297, %v1131, %v1110
        %v1140 = vsel %vm297, %v1132, %v1112
        %v1141 = vsel %vm297, %v1133, %v1114
        %v1142 = vsel %vm297, %v1134, %v1116
        %v1143 = vsel %vm297, %v1135, %v1118
        %v1144 = vsel %vm297, %v1136, %v1120
        %1145 = vst.msk [vmem:[%s307 + $0x80] sm:$0xff] %vm308, %v1137
        %1146 = vst.msk [vmem:[%s307 + $0x88] sm:$0xff] %vm308, %v1138
        %1147 = vst.msk [vmem:[%s307 + $0x90] sm:$0xff] %vm308, %v1139
        %1148 = vst.msk [vmem:[%s307 + $0x98] sm:$0xff] %vm308, %v1140
        %1149 = vst.msk [vmem:[%s307 + $0xa0] sm:$0xff] %vm308, %v1141
        %1150 = vst.msk [vmem:[%s307 + $0xa8] sm:$0xff] %vm308, %v1142
        %1151 = vst.msk [vmem:[%s307 + $0xb0] sm:$0xff] %vm308, %v1143
        %1152 = vst.msk [vmem:[%s307 + $0xb8] sm:$0xff] %vm308, %v1144
        %s1153 = sadd.s32 %s197, 9
        %s1154 = smul.u32 %s1153, 24
        %s1155 = scalar_lea.vmem %s182, %s1154
        %v1156 = vld [vmem:[%s1155] sm:$0xff]
        %v1157 = vld [vmem:[%s1155 + $0x8] sm:$0xff]
        %v1158 = vld [vmem:[%s1155 + $0x18] sm:$0xff]
        %v1159 = vld [vmem:[%s1155 + $0x20] sm:$0xff]
        %v1160 = vld [vmem:[%s1155 + $0x30] sm:$0xff]
        %v1161 = vld [vmem:[%s1155 + $0x38] sm:$0xff]
        %v1162 = vld [vmem:[%s1155 + $0x48] sm:$0xff]
        %v1163 = vld [vmem:[%s1155 + $0x50] sm:$0xff]
        %v1164 = vld [vmem:[%s1155 + $0x1] sm:$0xff]
        %v1165 = vld [vmem:[%s1155 + $0x9] sm:$0xff]
        %v1166 = vld [vmem:[%s1155 + $0x19] sm:$0xff]
        %v1167 = vld [vmem:[%s1155 + $0x21] sm:$0xff]
        %v1168 = vld [vmem:[%s1155 + $0x31] sm:$0xff]
        %v1169 = vld [vmem:[%s1155 + $0x39] sm:$0xff]
        %v1170 = vld [vmem:[%s1155 + $0x49] sm:$0xff]
        %v1171 = vld [vmem:[%s1155 + $0x51] sm:$0xff]
        %v1172 = vld [vmem:[%s1155 + $0x2] sm:$0xff]
        %v1173 = vld [vmem:[%s1155 + $0xa] sm:$0xff]
        %v1174 = vld [vmem:[%s1155 + $0x1a] sm:$0xff]
        %v1175 = vld [vmem:[%s1155 + $0x22] sm:$0xff]
        %v1176 = vld [vmem:[%s1155 + $0x32] sm:$0xff]
        %v1177 = vld [vmem:[%s1155 + $0x3a] sm:$0xff]
        %v1178 = vld [vmem:[%s1155 + $0x4a] sm:$0xff]
        %v1179 = vld [vmem:[%s1155 + $0x52] sm:$0xff]
        %1188 = vrot.lane.b32.xlu0 %v1164, 4
        %v1189 = vpop.permute.xlu0 %1188
        %1190 = vrot.lane.b32.xlu0 %v1165, 4
        %v1191 = vpop.permute.xlu0 %1190
        %1192 = vrot.lane.b32.xlu0 %v1166, 4
        %v1193 = vpop.permute.xlu0 %1192
        %1194 = vrot.lane.b32.xlu0 %v1167, 4
        %v1195 = vpop.permute.xlu0 %1194
        %1196 = vrot.lane.b32.xlu0 %v1168, 4
        %v1197 = vpop.permute.xlu0 %1196
        %1198 = vrot.lane.b32.xlu0 %v1169, 4
        %v1199 = vpop.permute.xlu0 %1198
        %1200 = vrot.lane.b32.xlu0 %v1170, 4
        %v1201 = vpop.permute.xlu0 %1200
        %1202 = vrot.lane.b32.xlu0 %v1171, 4
        %v1203 = vpop.permute.xlu0 %1202
        %1220 = vrot.lane.b32.xlu0 %v1172, 8
        %v1221 = vpop.permute.xlu0 %1220
        %1222 = vrot.lane.b32.xlu0 %v1173, 8
        %v1223 = vpop.permute.xlu0 %1222
        %1224 = vrot.lane.b32.xlu0 %v1174, 8
        %v1225 = vpop.permute.xlu0 %1224
        %1226 = vrot.lane.b32.xlu0 %v1175, 8
        %v1227 = vpop.permute.xlu0 %1226
        %1228 = vrot.lane.b32.xlu0 %v1176, 8
        %v1229 = vpop.permute.xlu0 %1228
        %1230 = vrot.lane.b32.xlu0 %v1177, 8
        %v1231 = vpop.permute.xlu0 %1230
        %1232 = vrot.lane.b32.xlu0 %v1178, 8
        %v1233 = vpop.permute.xlu0 %1232
        %1234 = vrot.lane.b32.xlu0 %v1179, 8
        %v1235 = vpop.permute.xlu0 %1234
        %v1244 = vsel %vm288, %v1156, %v1189
        %v1245 = vsel %vm288, %v1157, %v1191
        %v1246 = vsel %vm288, %v1158, %v1193
        %v1247 = vsel %vm288, %v1159, %v1195
        %v1248 = vsel %vm288, %v1160, %v1197
        %v1249 = vsel %vm288, %v1161, %v1199
        %v1250 = vsel %vm288, %v1162, %v1201
        %v1251 = vsel %vm288, %v1163, %v1203
        %v1252 = vsel %vm297, %v1244, %v1221
        %v1253 = vsel %vm297, %v1245, %v1223
        %v1254 = vsel %vm297, %v1246, %v1225
        %v1255 = vsel %vm297, %v1247, %v1227
        %v1256 = vsel %vm297, %v1248, %v1229
        %v1257 = vsel %vm297, %v1249, %v1231
        %v1258 = vsel %vm297, %v1250, %v1233
        %v1259 = vsel %vm297, %v1251, %v1235
        %1268 = vrot.lane.b32.xlu0 %v1252, 12
        %v1269 = vpop.permute.xlu0 %1268
        %1270 = vrot.lane.b32.xlu0 %v1253, 12
        %v1271 = vpop.permute.xlu0 %1270
        %1272 = vrot.lane.b32.xlu0 %v1254, 12
        %v1273 = vpop.permute.xlu0 %1272
        %1274 = vrot.lane.b32.xlu0 %v1255, 12
        %v1275 = vpop.permute.xlu0 %1274
        %1276 = vrot.lane.b32.xlu0 %v1256, 12
        %v1277 = vpop.permute.xlu0 %1276
        %1278 = vrot.lane.b32.xlu0 %v1257, 12
        %v1279 = vpop.permute.xlu0 %1278
        %1280 = vrot.lane.b32.xlu0 %v1258, 12
        %v1281 = vpop.permute.xlu0 %1280
        %1282 = vrot.lane.b32.xlu0 %v1259, 12
        %v1283 = vpop.permute.xlu0 %1282
        %1292 = vst.msk [vmem:[%s307 + $0x80] sm:$0xff] %vm456, %v1269
        %1293 = vst.msk [vmem:[%s307 + $0x88] sm:$0xff] %vm456, %v1271
        %1294 = vst.msk [vmem:[%s307 + $0x90] sm:$0xff] %vm456, %v1273
        %1295 = vst.msk [vmem:[%s307 + $0x98] sm:$0xff] %vm456, %v1275
        %1296 = vst.msk [vmem:[%s307 + $0xa0] sm:$0xff] %vm456, %v1277
        %1297 = vst.msk [vmem:[%s307 + $0xa8] sm:$0xff] %vm456, %v1279
        %1298 = vst.msk [vmem:[%s307 + $0xb0] sm:$0xff] %vm456, %v1281
        %1299 = vst.msk [vmem:[%s307 + $0xb8] sm:$0xff] %vm456, %v1283
        %s1300 = sadd.s32 %s197, 10
        %s1301 = smul.u32 %s1300, 24
        %s1302 = scalar_lea.vmem %s182, %s1301
        %v1303 = vld [vmem:[%s1302] sm:$0xff]
        %v1304 = vld [vmem:[%s1302 + $0x8] sm:$0xff]
        %v1305 = vld [vmem:[%s1302 + $0x18] sm:$0xff]
        %v1306 = vld [vmem:[%s1302 + $0x20] sm:$0xff]
        %v1307 = vld [vmem:[%s1302 + $0x30] sm:$0xff]
        %v1308 = vld [vmem:[%s1302 + $0x38] sm:$0xff]
        %v1309 = vld [vmem:[%s1302 + $0x48] sm:$0xff]
        %v1310 = vld [vmem:[%s1302 + $0x50] sm:$0xff]
        %v1311 = vld [vmem:[%s1302 + $0x1] sm:$0xff]
        %v1312 = vld [vmem:[%s1302 + $0x9] sm:$0xff]
        %v1313 = vld [vmem:[%s1302 + $0x19] sm:$0xff]
        %v1314 = vld [vmem:[%s1302 + $0x21] sm:$0xff]
        %v1315 = vld [vmem:[%s1302 + $0x31] sm:$0xff]
        %v1316 = vld [vmem:[%s1302 + $0x39] sm:$0xff]
        %v1317 = vld [vmem:[%s1302 + $0x49] sm:$0xff]
        %v1318 = vld [vmem:[%s1302 + $0x51] sm:$0xff]
        %v1319 = vld [vmem:[%s1302 + $0x2] sm:$0xff]
        %v1320 = vld [vmem:[%s1302 + $0xa] sm:$0xff]
        %v1321 = vld [vmem:[%s1302 + $0x1a] sm:$0xff]
        %v1322 = vld [vmem:[%s1302 + $0x22] sm:$0xff]
        %v1323 = vld [vmem:[%s1302 + $0x32] sm:$0xff]
        %v1324 = vld [vmem:[%s1302 + $0x3a] sm:$0xff]
        %v1325 = vld [vmem:[%s1302 + $0x4a] sm:$0xff]
        %v1326 = vld [vmem:[%s1302 + $0x52] sm:$0xff]
        %1335 = vrot.lane.b32.xlu0 %v1311, 4
        %v1336 = vpop.permute.xlu0 %1335
        %1337 = vrot.lane.b32.xlu0 %v1312, 4
        %v1338 = vpop.permute.xlu0 %1337
        %1339 = vrot.lane.b32.xlu0 %v1313, 4
        %v1340 = vpop.permute.xlu0 %1339
        %1341 = vrot.lane.b32.xlu0 %v1314, 4
        %v1342 = vpop.permute.xlu0 %1341
        %1343 = vrot.lane.b32.xlu0 %v1315, 4
        %v1344 = vpop.permute.xlu0 %1343
        %1345 = vrot.lane.b32.xlu0 %v1316, 4
        %v1346 = vpop.permute.xlu0 %1345
        %1347 = vrot.lane.b32.xlu0 %v1317, 4
        %v1348 = vpop.permute.xlu0 %1347
        %1349 = vrot.lane.b32.xlu0 %v1318, 4
        %v1350 = vpop.permute.xlu0 %1349
        %1367 = vrot.lane.b32.xlu0 %v1319, 8
        %v1368 = vpop.permute.xlu0 %1367
        %1369 = vrot.lane.b32.xlu0 %v1320, 8
        %v1370 = vpop.permute.xlu0 %1369
        %1371 = vrot.lane.b32.xlu0 %v1321, 8
        %v1372 = vpop.permute.xlu0 %1371
        %1373 = vrot.lane.b32.xlu0 %v1322, 8
        %v1374 = vpop.permute.xlu0 %1373
        %1375 = vrot.lane.b32.xlu0 %v1323, 8
        %v1376 = vpop.permute.xlu0 %1375
        %1377 = vrot.lane.b32.xlu0 %v1324, 8
        %v1378 = vpop.permute.xlu0 %1377
        %1379 = vrot.lane.b32.xlu0 %v1325, 8
        %v1380 = vpop.permute.xlu0 %1379
        %1381 = vrot.lane.b32.xlu0 %v1326, 8
        %v1382 = vpop.permute.xlu0 %1381
        %v1391 = vsel %vm288, %v1303, %v1336
        %v1392 = vsel %vm288, %v1304, %v1338
        %v1393 = vsel %vm288, %v1305, %v1340
        %v1394 = vsel %vm288, %v1306, %v1342
        %v1395 = vsel %vm288, %v1307, %v1344
        %v1396 = vsel %vm288, %v1308, %v1346
        %v1397 = vsel %vm288, %v1309, %v1348
        %v1398 = vsel %vm288, %v1310, %v1350
        %v1399 = vsel %vm297, %v1391, %v1368
        %v1400 = vsel %vm297, %v1392, %v1370
        %v1401 = vsel %vm297, %v1393, %v1372
        %v1402 = vsel %vm297, %v1394, %v1374
        %v1403 = vsel %vm297, %v1395, %v1376
        %v1404 = vsel %vm297, %v1396, %v1378
        %v1405 = vsel %vm297, %v1397, %v1380
        %v1406 = vsel %vm297, %v1398, %v1382
        %v1407 = vsel %vm308, %v1399, 0.0
        %v1408 = vsel %vm308, %v1400, 0.0
        %v1409 = vsel %vm308, %v1401, 0.0
        %v1410 = vsel %vm308, %v1402, 0.0
        %v1411 = vsel %vm308, %v1403, 0.0
        %v1412 = vsel %vm308, %v1404, 0.0
        %v1413 = vsel %vm308, %v1405, 0.0
        %v1414 = vsel %vm308, %v1406, 0.0
        %1423 = vrot.lane.b32.xlu0 %v1407, 24
        %v1424 = vpop.permute.xlu0 %1423
        %1425 = vrot.lane.b32.xlu0 %v1408, 24
        %v1426 = vpop.permute.xlu0 %1425
        %1427 = vrot.lane.b32.xlu0 %v1409, 24
        %v1428 = vpop.permute.xlu0 %1427
        %1429 = vrot.lane.b32.xlu0 %v1410, 24
        %v1430 = vpop.permute.xlu0 %1429
        %1431 = vrot.lane.b32.xlu0 %v1411, 24
        %v1432 = vpop.permute.xlu0 %1431
        %1433 = vrot.lane.b32.xlu0 %v1412, 24
        %v1434 = vpop.permute.xlu0 %1433
        %1435 = vrot.lane.b32.xlu0 %v1413, 24
        %v1436 = vpop.permute.xlu0 %1435
        %1437 = vrot.lane.b32.xlu0 %v1414, 24
        %v1438 = vpop.permute.xlu0 %1437
        %1447 = vst.msk [vmem:[%s307 + $0x80] sm:$0xff] %vm612, %v1424
        %1448 = vst.msk [vmem:[%s307 + $0x88] sm:$0xff] %vm612, %v1426
        %1449 = vst.msk [vmem:[%s307 + $0x90] sm:$0xff] %vm612, %v1428
        %1450 = vst.msk [vmem:[%s307 + $0x98] sm:$0xff] %vm612, %v1430
        %1451 = vst.msk [vmem:[%s307 + $0xa0] sm:$0xff] %vm612, %v1432
        %1452 = vst.msk [vmem:[%s307 + $0xa8] sm:$0xff] %vm612, %v1434
        %1453 = vst.msk [vmem:[%s307 + $0xb0] sm:$0xff] %vm612, %v1436
        %1454 = vst.msk [vmem:[%s307 + $0xb8] sm:$0xff] %vm612, %v1438
        %s1455 = sadd.s32 %s197, 12
        %s1456 = smul.u32 %s1455, 24
        %s1457 = scalar_lea.vmem %s182, %s1456
        %v1458 = vld [vmem:[%s1457] sm:$0xff]
        %v1459 = vld [vmem:[%s1457 + $0x8] sm:$0xff]
        %v1460 = vld [vmem:[%s1457 + $0x18] sm:$0xff]
        %v1461 = vld [vmem:[%s1457 + $0x20] sm:$0xff]
        %v1462 = vld [vmem:[%s1457 + $0x30] sm:$0xff]
        %v1463 = vld [vmem:[%s1457 + $0x38] sm:$0xff]
        %v1464 = vld [vmem:[%s1457 + $0x48] sm:$0xff]
        %v1465 = vld [vmem:[%s1457 + $0x50] sm:$0xff]
        %v1466 = vld [vmem:[%s1457 + $0x1] sm:$0xff]
        %v1467 = vld [vmem:[%s1457 + $0x9] sm:$0xff]
        %v1468 = vld [vmem:[%s1457 + $0x19] sm:$0xff]
        %v1469 = vld [vmem:[%s1457 + $0x21] sm:$0xff]
        %v1470 = vld [vmem:[%s1457 + $0x31] sm:$0xff]
        %v1471 = vld [vmem:[%s1457 + $0x39] sm:$0xff]
        %v1472 = vld [vmem:[%s1457 + $0x49] sm:$0xff]
        %v1473 = vld [vmem:[%s1457 + $0x51] sm:$0xff]
        %v1474 = vld [vmem:[%s1457 + $0x2] sm:$0xff]
        %v1475 = vld [vmem:[%s1457 + $0xa] sm:$0xff]
        %v1476 = vld [vmem:[%s1457 + $0x1a] sm:$0xff]
        %v1477 = vld [vmem:[%s1457 + $0x22] sm:$0xff]
        %v1478 = vld [vmem:[%s1457 + $0x32] sm:$0xff]
        %v1479 = vld [vmem:[%s1457 + $0x3a] sm:$0xff]
        %v1480 = vld [vmem:[%s1457 + $0x4a] sm:$0xff]
        %v1481 = vld [vmem:[%s1457 + $0x52] sm:$0xff]
        %1490 = vrot.lane.b32.xlu0 %v1466, 4
        %v1491 = vpop.permute.xlu0 %1490
        %1492 = vrot.lane.b32.xlu0 %v1467, 4
        %v1493 = vpop.permute.xlu0 %1492
        %1494 = vrot.lane.b32.xlu0 %v1468, 4
        %v1495 = vpop.permute.xlu0 %1494
        %1496 = vrot.lane.b32.xlu0 %v1469, 4
        %v1497 = vpop.permute.xlu0 %1496
        %1498 = vrot.lane.b32.xlu0 %v1470, 4
        %v1499 = vpop.permute.xlu0 %1498
        %1500 = vrot.lane.b32.xlu0 %v1471, 4
        %v1501 = vpop.permute.xlu0 %1500
        %1502 = vrot.lane.b32.xlu0 %v1472, 4
        %v1503 = vpop.permute.xlu0 %1502
        %1504 = vrot.lane.b32.xlu0 %v1473, 4
        %v1505 = vpop.permute.xlu0 %1504
        %1522 = vrot.lane.b32.xlu0 %v1474, 8
        %v1523 = vpop.permute.xlu0 %1522
        %1524 = vrot.lane.b32.xlu0 %v1475, 8
        %v1525 = vpop.permute.xlu0 %1524
        %1526 = vrot.lane.b32.xlu0 %v1476, 8
        %v1527 = vpop.permute.xlu0 %1526
        %1528 = vrot.lane.b32.xlu0 %v1477, 8
        %v1529 = vpop.permute.xlu0 %1528
        %1530 = vrot.lane.b32.xlu0 %v1478, 8
        %v1531 = vpop.permute.xlu0 %1530
        %1532 = vrot.lane.b32.xlu0 %v1479, 8
        %v1533 = vpop.permute.xlu0 %1532
        %1534 = vrot.lane.b32.xlu0 %v1480, 8
        %v1535 = vpop.permute.xlu0 %1534
        %1536 = vrot.lane.b32.xlu0 %v1481, 8
        %v1537 = vpop.permute.xlu0 %1536
        %v1546 = vsel %vm288, %v1458, %v1491
        %v1547 = vsel %vm288, %v1459, %v1493
        %v1548 = vsel %vm288, %v1460, %v1495
        %v1549 = vsel %vm288, %v1461, %v1497
        %v1550 = vsel %vm288, %v1462, %v1499
        %v1551 = vsel %vm288, %v1463, %v1501
        %v1552 = vsel %vm288, %v1464, %v1503
        %v1553 = vsel %vm288, %v1465, %v1505
        %v1554 = vsel %vm297, %v1546, %v1523
        %v1555 = vsel %vm297, %v1547, %v1525
        %v1556 = vsel %vm297, %v1548, %v1527
        %v1557 = vsel %vm297, %v1549, %v1529
        %v1558 = vsel %vm297, %v1550, %v1531
        %v1559 = vsel %vm297, %v1551, %v1533
        %v1560 = vsel %vm297, %v1552, %v1535
        %v1561 = vsel %vm297, %v1553, %v1537
        %1562 = vst.msk [vmem:[%s307 + $0xc0] sm:$0xff] %vm308, %v1554
        %1563 = vst.msk [vmem:[%s307 + $0xc8] sm:$0xff] %vm308, %v1555
        %1564 = vst.msk [vmem:[%s307 + $0xd0] sm:$0xff] %vm308, %v1556
        %1565 = vst.msk [vmem:[%s307 + $0xd8] sm:$0xff] %vm308, %v1557
        %1566 = vst.msk [vmem:[%s307 + $0xe0] sm:$0xff] %vm308, %v1558
        %1567 = vst.msk [vmem:[%s307 + $0xe8] sm:$0xff] %vm308, %v1559
        %1568 = vst.msk [vmem:[%s307 + $0xf0] sm:$0xff] %vm308, %v1560
        %1569 = vst.msk [vmem:[%s307 + $0xf8] sm:$0xff] %vm308, %v1561
        %s1570 = sadd.s32 %s197, 13
        %s1571 = smul.u32 %s1570, 24
        %s1572 = scalar_lea.vmem %s182, %s1571
        %v1573 = vld [vmem:[%s1572] sm:$0xff]
        %v1574 = vld [vmem:[%s1572 + $0x8] sm:$0xff]
        %v1575 = vld [vmem:[%s1572 + $0x18] sm:$0xff]
        %v1576 = vld [vmem:[%s1572 + $0x20] sm:$0xff]
        %v1577 = vld [vmem:[%s1572 + $0x30] sm:$0xff]
        %v1578 = vld [vmem:[%s1572 + $0x38] sm:$0xff]
        %v1579 = vld [vmem:[%s1572 + $0x48] sm:$0xff]
        %v1580 = vld [vmem:[%s1572 + $0x50] sm:$0xff]
        %v1581 = vld [vmem:[%s1572 + $0x1] sm:$0xff]
        %v1582 = vld [vmem:[%s1572 + $0x9] sm:$0xff]
        %v1583 = vld [vmem:[%s1572 + $0x19] sm:$0xff]
        %v1584 = vld [vmem:[%s1572 + $0x21] sm:$0xff]
        %v1585 = vld [vmem:[%s1572 + $0x31] sm:$0xff]
        %v1586 = vld [vmem:[%s1572 + $0x39] sm:$0xff]
        %v1587 = vld [vmem:[%s1572 + $0x49] sm:$0xff]
        %v1588 = vld [vmem:[%s1572 + $0x51] sm:$0xff]
        %v1589 = vld [vmem:[%s1572 + $0x2] sm:$0xff]
        %v1590 = vld [vmem:[%s1572 + $0xa] sm:$0xff]
        %v1591 = vld [vmem:[%s1572 + $0x1a] sm:$0xff]
        %v1592 = vld [vmem:[%s1572 + $0x22] sm:$0xff]
        %v1593 = vld [vmem:[%s1572 + $0x32] sm:$0xff]
        %v1594 = vld [vmem:[%s1572 + $0x3a] sm:$0xff]
        %v1595 = vld [vmem:[%s1572 + $0x4a] sm:$0xff]
        %v1596 = vld [vmem:[%s1572 + $0x52] sm:$0xff]
        %1605 = vrot.lane.b32.xlu0 %v1581, 4
        %v1606 = vpop.permute.xlu0 %1605
        %1607 = vrot.lane.b32.xlu0 %v1582, 4
        %v1608 = vpop.permute.xlu0 %1607
        %1609 = vrot.lane.b32.xlu0 %v1583, 4
        %v1610 = vpop.permute.xlu0 %1609
        %1611 = vrot.lane.b32.xlu0 %v1584, 4
        %v1612 = vpop.permute.xlu0 %1611
        %1613 = vrot.lane.b32.xlu0 %v1585, 4
        %v1614 = vpop.permute.xlu0 %1613
        %1615 = vrot.lane.b32.xlu0 %v1586, 4
        %v1616 = vpop.permute.xlu0 %1615
        %1617 = vrot.lane.b32.xlu0 %v1587, 4
        %v1618 = vpop.permute.xlu0 %1617
        %1619 = vrot.lane.b32.xlu0 %v1588, 4
        %v1620 = vpop.permute.xlu0 %1619
        %1637 = vrot.lane.b32.xlu0 %v1589, 8
        %v1638 = vpop.permute.xlu0 %1637
        %1639 = vrot.lane.b32.xlu0 %v1590, 8
        %v1640 = vpop.permute.xlu0 %1639
        %1641 = vrot.lane.b32.xlu0 %v1591, 8
        %v1642 = vpop.permute.xlu0 %1641
        %1643 = vrot.lane.b32.xlu0 %v1592, 8
        %v1644 = vpop.permute.xlu0 %1643
        %1645 = vrot.lane.b32.xlu0 %v1593, 8
        %v1646 = vpop.permute.xlu0 %1645
        %1647 = vrot.lane.b32.xlu0 %v1594, 8
        %v1648 = vpop.permute.xlu0 %1647
        %1649 = vrot.lane.b32.xlu0 %v1595, 8
        %v1650 = vpop.permute.xlu0 %1649
        %1651 = vrot.lane.b32.xlu0 %v1596, 8
        %v1652 = vpop.permute.xlu0 %1651
        %v1661 = vsel %vm288, %v1573, %v1606
        %v1662 = vsel %vm288, %v1574, %v1608
        %v1663 = vsel %vm288, %v1575, %v1610
        %v1664 = vsel %vm288, %v1576, %v1612
        %v1665 = vsel %vm288, %v1577, %v1614
        %v1666 = vsel %vm288, %v1578, %v1616
        %v1667 = vsel %vm288, %v1579, %v1618
        %v1668 = vsel %vm288, %v1580, %v1620
        %v1669 = vsel %vm297, %v1661, %v1638
        %v1670 = vsel %vm297, %v1662, %v1640
        %v1671 = vsel %vm297, %v1663, %v1642
        %v1672 = vsel %vm297, %v1664, %v1644
        %v1673 = vsel %vm297, %v1665, %v1646
        %v1674 = vsel %vm297, %v1666, %v1648
        %v1675 = vsel %vm297, %v1667, %v1650
        %v1676 = vsel %vm297, %v1668, %v1652
        %1685 = vrot.lane.b32.xlu0 %v1669, 12
        %v1686 = vpop.permute.xlu0 %1685
        %1687 = vrot.lane.b32.xlu0 %v1670, 12
        %v1688 = vpop.permute.xlu0 %1687
        %1689 = vrot.lane.b32.xlu0 %v1671, 12
        %v1690 = vpop.permute.xlu0 %1689
        %1691 = vrot.lane.b32.xlu0 %v1672, 12
        %v1692 = vpop.permute.xlu0 %1691
        %1693 = vrot.lane.b32.xlu0 %v1673, 12
        %v1694 = vpop.permute.xlu0 %1693
        %1695 = vrot.lane.b32.xlu0 %v1674, 12
        %v1696 = vpop.permute.xlu0 %1695
        %1697 = vrot.lane.b32.xlu0 %v1675, 12
        %v1698 = vpop.permute.xlu0 %1697
        %1699 = vrot.lane.b32.xlu0 %v1676, 12
        %v1700 = vpop.permute.xlu0 %1699
        %1709 = vst.msk [vmem:[%s307 + $0xc0] sm:$0xff] %vm456, %v1686
        %1710 = vst.msk [vmem:[%s307 + $0xc8] sm:$0xff] %vm456, %v1688
        %1711 = vst.msk [vmem:[%s307 + $0xd0] sm:$0xff] %vm456, %v1690
        %1712 = vst.msk [vmem:[%s307 + $0xd8] sm:$0xff] %vm456, %v1692
        %1713 = vst.msk [vmem:[%s307 + $0xe0] sm:$0xff] %vm456, %v1694
        %1714 = vst.msk [vmem:[%s307 + $0xe8] sm:$0xff] %vm456, %v1696
        %1715 = vst.msk [vmem:[%s307 + $0xf0] sm:$0xff] %vm456, %v1698
        %1716 = vst.msk [vmem:[%s307 + $0xf8] sm:$0xff] %vm456, %v1700
        %s1717 = sadd.s32 %s197, 14
        %s1718 = smul.u32 %s1717, 24
        %s1719 = scalar_lea.vmem %s182, %s1718
        %v1720 = vld [vmem:[%s1719] sm:$0xff]
        %v1721 = vld [vmem:[%s1719 + $0x8] sm:$0xff]
        %v1722 = vld [vmem:[%s1719 + $0x18] sm:$0xff]
        %v1723 = vld [vmem:[%s1719 + $0x20] sm:$0xff]
        %v1724 = vld [vmem:[%s1719 + $0x30] sm:$0xff]
        %v1725 = vld [vmem:[%s1719 + $0x38] sm:$0xff]
        %v1726 = vld [vmem:[%s1719 + $0x48] sm:$0xff]
        %v1727 = vld [vmem:[%s1719 + $0x50] sm:$0xff]
        %v1728 = vld [vmem:[%s1719 + $0x1] sm:$0xff]
        %v1729 = vld [vmem:[%s1719 + $0x9] sm:$0xff]
        %v1730 = vld [vmem:[%s1719 + $0x19] sm:$0xff]
        %v1731 = vld [vmem:[%s1719 + $0x21] sm:$0xff]
        %v1732 = vld [vmem:[%s1719 + $0x31] sm:$0xff]
        %v1733 = vld [vmem:[%s1719 + $0x39] sm:$0xff]
        %v1734 = vld [vmem:[%s1719 + $0x49] sm:$0xff]
        %v1735 = vld [vmem:[%s1719 + $0x51] sm:$0xff]
        %v1736 = vld [vmem:[%s1719 + $0x2] sm:$0xff]
        %v1737 = vld [vmem:[%s1719 + $0xa] sm:$0xff]
        %v1738 = vld [vmem:[%s1719 + $0x1a] sm:$0xff]
        %v1739 = vld [vmem:[%s1719 + $0x22] sm:$0xff]
        %v1740 = vld [vmem:[%s1719 + $0x32] sm:$0xff]
        %v1741 = vld [vmem:[%s1719 + $0x3a] sm:$0xff]
        %v1742 = vld [vmem:[%s1719 + $0x4a] sm:$0xff]
        %v1743 = vld [vmem:[%s1719 + $0x52] sm:$0xff]
        %1752 = vrot.lane.b32.xlu0 %v1728, 4
        %v1753 = vpop.permute.xlu0 %1752
        %1754 = vrot.lane.b32.xlu0 %v1729, 4
        %v1755 = vpop.permute.xlu0 %1754
        %1756 = vrot.lane.b32.xlu0 %v1730, 4
        %v1757 = vpop.permute.xlu0 %1756
        %1758 = vrot.lane.b32.xlu0 %v1731, 4
        %v1759 = vpop.permute.xlu0 %1758
        %1760 = vrot.lane.b32.xlu0 %v1732, 4
        %v1761 = vpop.permute.xlu0 %1760
        %1762 = vrot.lane.b32.xlu0 %v1733, 4
        %v1763 = vpop.permute.xlu0 %1762
        %1764 = vrot.lane.b32.xlu0 %v1734, 4
        %v1765 = vpop.permute.xlu0 %1764
        %1766 = vrot.lane.b32.xlu0 %v1735, 4
        %v1767 = vpop.permute.xlu0 %1766
        %1784 = vrot.lane.b32.xlu0 %v1736, 8
        %v1785 = vpop.permute.xlu0 %1784
        %1786 = vrot.lane.b32.xlu0 %v1737, 8
        %v1787 = vpop.permute.xlu0 %1786
        %1788 = vrot.lane.b32.xlu0 %v1738, 8
        %v1789 = vpop.permute.xlu0 %1788
        %1790 = vrot.lane.b32.xlu0 %v1739, 8
        %v1791 = vpop.permute.xlu0 %1790
        %1792 = vrot.lane.b32.xlu0 %v1740, 8
        %v1793 = vpop.permute.xlu0 %1792
        %1794 = vrot.lane.b32.xlu0 %v1741, 8
        %v1795 = vpop.permute.xlu0 %1794
        %1796 = vrot.lane.b32.xlu0 %v1742, 8
        %v1797 = vpop.permute.xlu0 %1796
        %1798 = vrot.lane.b32.xlu0 %v1743, 8
        %v1799 = vpop.permute.xlu0 %1798
        %v1808 = vsel %vm288, %v1720, %v1753
        %v1809 = vsel %vm288, %v1721, %v1755
        %v1810 = vsel %vm288, %v1722, %v1757
        %v1811 = vsel %vm288, %v1723, %v1759
        %v1812 = vsel %vm288, %v1724, %v1761
        %v1813 = vsel %vm288, %v1725, %v1763
        %v1814 = vsel %vm288, %v1726, %v1765
        %v1815 = vsel %vm288, %v1727, %v1767
        %v1816 = vsel %vm297, %v1808, %v1785
        %v1817 = vsel %vm297, %v1809, %v1787
        %v1818 = vsel %vm297, %v1810, %v1789
        %v1819 = vsel %vm297, %v1811, %v1791
        %v1820 = vsel %vm297, %v1812, %v1793
        %v1821 = vsel %vm297, %v1813, %v1795
        %v1822 = vsel %vm297, %v1814, %v1797
        %v1823 = vsel %vm297, %v1815, %v1799
        %v1824 = vsel %vm308, %v1816, 0.0
        %v1825 = vsel %vm308, %v1817, 0.0
        %v1826 = vsel %vm308, %v1818, 0.0
        %v1827 = vsel %vm308, %v1819, 0.0
        %v1828 = vsel %vm308, %v1820, 0.0
        %v1829 = vsel %vm308, %v1821, 0.0
        %v1830 = vsel %vm308, %v1822, 0.0
        %v1831 = vsel %vm308, %v1823, 0.0
        %1840 = vrot.lane.b32.xlu0 %v1824, 24
        %v1841 = vpop.permute.xlu0 %1840
        %1842 = vrot.lane.b32.xlu0 %v1825, 24
        %v1843 = vpop.permute.xlu0 %1842
        %1844 = vrot.lane.b32.xlu0 %v1826, 24
        %v1845 = vpop.permute.xlu0 %1844
        %1846 = vrot.lane.b32.xlu0 %v1827, 24
        %v1847 = vpop.permute.xlu0 %1846
        %1848 = vrot.lane.b32.xlu0 %v1828, 24
        %v1849 = vpop.permute.xlu0 %1848
        %1850 = vrot.lane.b32.xlu0 %v1829, 24
        %v1851 = vpop.permute.xlu0 %1850
        %1852 = vrot.lane.b32.xlu0 %v1830, 24
        %v1853 = vpop.permute.xlu0 %1852
        %1854 = vrot.lane.b32.xlu0 %v1831, 24
        %v1855 = vpop.permute.xlu0 %1854
        %1864 = vst.msk [vmem:[%s307 + $0xc0] sm:$0xff] %vm612, %v1841
        %1865 = vst.msk [vmem:[%s307 + $0xc8] sm:$0xff] %vm612, %v1843
        %1866 = vst.msk [vmem:[%s307 + $0xd0] sm:$0xff] %vm612, %v1845
        %1867 = vst.msk [vmem:[%s307 + $0xd8] sm:$0xff] %vm612, %v1847
        %1868 = vst.msk [vmem:[%s307 + $0xe0] sm:$0xff] %vm612, %v1849
        %1869 = vst.msk [vmem:[%s307 + $0xe8] sm:$0xff] %vm612, %v1851
        %1870 = vst.msk [vmem:[%s307 + $0xf0] sm:$0xff] %vm612, %v1853
        %1871 = vst.msk [vmem:[%s307 + $0xf8] sm:$0xff] %vm612, %v1855
        %v1872 = vld [vmem:[%s307] sm:$0xff]
        %v1873 = vld [vmem:[%s307 + $0x8] sm:$0xff]
        %v1874 = vld [vmem:[%s307 + $0x10] sm:$0xff]
        %v1875 = vld [vmem:[%s307 + $0x18] sm:$0xff]
        %v1876 = vld [vmem:[%s307 + $0x20] sm:$0xff]
        %v1877 = vld [vmem:[%s307 + $0x28] sm:$0xff]
        %v1878 = vld [vmem:[%s307 + $0x30] sm:$0xff]
        %v1879 = vld [vmem:[%s307 + $0x38] sm:$0xff]
        %v1880 = vld [vmem:[%s307 + $0x40] sm:$0xff]
        %v1881 = vld [vmem:[%s307 + $0x48] sm:$0xff]
        %v1882 = vld [vmem:[%s307 + $0x50] sm:$0xff]
        %v1883 = vld [vmem:[%s307 + $0x58] sm:$0xff]
        %v1884 = vld [vmem:[%s307 + $0x60] sm:$0xff]
        %v1885 = vld [vmem:[%s307 + $0x68] sm:$0xff]
        %v1886 = vld [vmem:[%s307 + $0x70] sm:$0xff]
        %v1887 = vld [vmem:[%s307 + $0x78] sm:$0xff]
        %v1888 = vld [vmem:[%s307 + $0x80] sm:$0xff]
        %v1889 = vld [vmem:[%s307 + $0x88] sm:$0xff]
        %v1890 = vld [vmem:[%s307 + $0x90] sm:$0xff]
        %v1891 = vld [vmem:[%s307 + $0x98] sm:$0xff]
        %v1892 = vld [vmem:[%s307 + $0xa0] sm:$0xff]
        %v1893 = vld [vmem:[%s307 + $0xa8] sm:$0xff]
        %v1894 = vld [vmem:[%s307 + $0xb0] sm:$0xff]
        %v1895 = vld [vmem:[%s307 + $0xb8] sm:$0xff]
        %v1896 = vld [vmem:[%s307 + $0xc0] sm:$0xff]
        %v1897 = vld [vmem:[%s307 + $0xc8] sm:$0xff]
        %v1898 = vld [vmem:[%s307 + $0xd0] sm:$0xff]
        %v1899 = vld [vmem:[%s307 + $0xd8] sm:$0xff]
        %v1900 = vld [vmem:[%s307 + $0xe0] sm:$0xff]
        %v1901 = vld [vmem:[%s307 + $0xe8] sm:$0xff]
        %v1902 = vld [vmem:[%s307 + $0xf0] sm:$0xff]
        %v1903 = vld [vmem:[%s307 + $0xf8] sm:$0xff]
        %v1904 = vld [vmem:[%s1] sm:$0xff]
        %v1905 = vld [vmem:[%s1 + $0x8] sm:$0xff]
        %v1906 = vld [vmem:[%s1 + $0x10] sm:$0xff]
        %v1907 = vld [vmem:[%s1 + $0x18] sm:$0xff]
        %v1908 = vld [vmem:[%s1 + $0x20] sm:$0xff]
        %v1909 = vld [vmem:[%s1 + $0x28] sm:$0xff]
        %v1910 = vld [vmem:[%s1 + $0x30] sm:$0xff]
        %v1911 = vld [vmem:[%s1 + $0x38] sm:$0xff]
        %v1912 = vld [vmem:[%s1 + $0x40] sm:$0xff]
        %v1913 = vld [vmem:[%s1 + $0x48] sm:$0xff]
        %v1914 = vld [vmem:[%s1 + $0x50] sm:$0xff]
        %v1915 = vld [vmem:[%s1 + $0x58] sm:$0xff]
        %v1916 = vld [vmem:[%s1 + $0x60] sm:$0xff]
        %v1917 = vld [vmem:[%s1 + $0x68] sm:$0xff]
        %v1918 = vld [vmem:[%s1 + $0x70] sm:$0xff]
        %v1919 = vld [vmem:[%s1 + $0x78] sm:$0xff]
        %v1920 = vld [vmem:[%s2] sm:$0x1]
        %v1922 = vlaneseq
        %v1923 = vshrl.u32 %v1922, 7
        %v1924 = vsub.s32 0, %v1923
        %v1925 = vrot.slane %v1920, %v1924
        %1927 = vmatprep.subr.mxu0 0.0
        %1928 = vmatpush1.msra.mxu0 %v1904
        %1929 = vmatprep.subr.mxu0 0.0
        %1930 = vmatpush1.msra.mxu0 %v1905
        %1931 = vmatprep.subr.mxu0 0.0
        %1932 = vmatpush1.msra.mxu0 %v1906
        %1933 = vmatprep.subr.mxu0 0.0
        %1934 = vmatpush1.msra.mxu0 %v1907
        %1935 = vmatprep.subr.mxu0 0.0
        %1936 = vmatpush1.msra.mxu0 %v1908
        %1937 = vmatprep.subr.mxu0 0.0
        %1938 = vmatpush1.msra.mxu0 %v1909
        %1939 = vmatprep.subr.mxu0 0.0
        %1940 = vmatpush1.msra.mxu0 %v1910
        %1941 = vmatprep.subr.mxu0 0.0
        %1942 = vmatpush1.msra.mxu0 %v1911
        %1943 = vmatprep.subr.mxu0 0.0
        %1944 = vmatpush1.msra.mxu0 %v1912
        %1945 = vmatprep.subr.mxu0 0.0
        %1946 = vmatpush1.msra.mxu0 %v1913
        %1947 = vmatprep.subr.mxu0 0.0
        %1948 = vmatpush1.msra.mxu0 %v1914
        %1949 = vmatprep.subr.mxu0 0.0
        %1950 = vmatpush1.msra.mxu0 %v1915
        %1951 = vmatprep.subr.mxu0 0.0
        %1952 = vmatpush1.msra.mxu0 %v1916
        %1953 = vmatprep.subr.mxu0 0.0
        %1954 = vmatpush1.msra.mxu0 %v1917
        %1955 = vmatprep.subr.mxu0 0.0
        %1956 = vmatpush1.msra.mxu0 %v1918
        %1957 = vmatprep.subr.mxu0 0.0
        %1958 = vmatpush1.msra.mxu0 %v1919
        %1959 = vmatprep.subr.mxu0 0.0
        %1960 = vmatpush1.msra.mxu0 0.0
        %1961 = vmatprep.subr.mxu0 0.0
        %1962 = vmatpush1.msra.mxu0 0.0
        %1963 = vmatprep.subr.mxu0 0.0
        %1964 = vmatpush1.msra.mxu0 0.0
        %1965 = vmatprep.subr.mxu0 0.0
        %1966 = vmatpush1.msra.mxu0 0.0
        %1967 = vmatprep.subr.mxu0 0.0
        %1968 = vmatpush1.msra.mxu0 0.0
        %1969 = vmatprep.subr.mxu0 0.0
        %1970 = vmatpush1.msra.mxu0 0.0
        %1971 = vmatprep.subr.mxu0 0.0
        %1972 = vmatpush1.msra.mxu0 0.0
        %1973 = vmatprep.subr.mxu0 0.0
        %1974 = vmatpush1.msra.mxu0 0.0
        %1975 = vmatprep.subr.mxu0 0.0
        %1976 = vmatpush1.msra.mxu0 0.0
        %1977 = vmatprep.subr.mxu0 0.0
        %1978 = vmatpush1.msra.mxu0 0.0
        %1979 = vmatprep.subr.mxu0 0.0
        %1980 = vmatpush1.msra.mxu0 0.0
        %1981 = vmatprep.subr.mxu0 0.0
        %1982 = vmatpush1.msra.mxu0 0.0
        %1983 = vmatprep.subr.mxu0 0.0
        %1984 = vmatpush1.msra.mxu0 0.0
        %1985 = vmatprep.subr.mxu0 0.0
        %1986 = vmatpush1.msra.mxu0 0.0
        %1987 = vmatprep.subr.mxu0 0.0
        %1988 = vmatpush1.msra.mxu0 0.0
        %1989 = vmatprep.subr.mxu0 0.0
        %1990 = vmatpush1.msra.mxu0 0.0
        %1991 = vmatprep.mubr.f32.mxu0 0.0
        %1992 = vmatmul.mubr.f32.gmra.mrb[0].mxu0 %v1872
        %v1993 = vpop.f32.mrb[0].mxu0
        %v1994 = vadd.f32 %v1925, %v1993
        %v1995 = vpop.f32.mrb[0].mxu0
        %1996 = vmatprep.mubr.f32.mxu0 0.0
        %1997 = vmatmul.mubr.f32.gmra.mrb[0].mxu0 %v1873
        %v1998 = vpop.f32.mrb[0].mxu0
        %v1999 = vadd.f32 %v1925, %v1998
        %v2000 = vpop.f32.mrb[0].mxu0
        %2001 = vmatprep.mubr.f32.mxu0 0.0
        %2002 = vmatmul.mubr.f32.gmra.mrb[0].mxu0 %v1874
        %v2003 = vpop.f32.mrb[0].mxu0
        %v2004 = vadd.f32 %v1925, %v2003
        %v2005 = vpop.f32.mrb[0].mxu0
        %2006 = vmatprep.mubr.f32.mxu0 0.0
        %2007 = vmatmul.mubr.f32.gmra.mrb[0].mxu0 %v1875
        %v2008 = vpop.f32.mrb[0].mxu0
        %v2009 = vadd.f32 %v1925, %v2008
        %v2010 = vpop.f32.mrb[0].mxu0
        %2011 = vmatprep.mubr.f32.mxu0 0.0
        %2012 = vmatmul.mubr.f32.gmra.mrb[0].mxu0 %v1876
        %v2013 = vpop.f32.mrb[0].mxu0
        %v2014 = vadd.f32 %v1925, %v2013
        %v2015 = vpop.f32.mrb[0].mxu0
        %2016 = vmatprep.mubr.f32.mxu0 0.0
        %2017 = vmatmul.mubr.f32.gmra.mrb[0].mxu0 %v1877
        %v2018 = vpop.f32.mrb[0].mxu0
        %v2019 = vadd.f32 %v1925, %v2018
        %v2020 = vpop.f32.mrb[0].mxu0
        %2021 = vmatprep.mubr.f32.mxu0 0.0
        %2022 = vmatmul.mubr.f32.gmra.mrb[0].mxu0 %v1878
        %v2023 = vpop.f32.mrb[0].mxu0
        %v2024 = vadd.f32 %v1925, %v2023
        %v2025 = vpop.f32.mrb[0].mxu0
        %2026 = vmatprep.mubr.f32.mxu0 0.0
        %2027 = vmatmul.mubr.f32.gmra.mrb[0].mxu0 %v1879
        %v2028 = vpop.f32.mrb[0].mxu0
        %v2029 = vadd.f32 %v1925, %v2028
        %v2030 = vpop.f32.mrb[0].mxu0
        %2031 = vmatprep.mubr.f32.mxu0 0.0
        %2032 = vmatmul.mubr.f32.gmra.mrb[0].mxu0 %v1880
        %v2033 = vpop.f32.mrb[0].mxu0
        %v2034 = vadd.f32 %v1925, %v2033
        %v2035 = vpop.f32.mrb[0].mxu0
        %2036 = vmatprep.mubr.f32.mxu0 0.0
        %2037 = vmatmul.mubr.f32.gmra.mrb[0].mxu0 %v1881
        %v2038 = vpop.f32.mrb[0].mxu0
        %v2039 = vadd.f32 %v1925, %v2038
        %v2040 = vpop.f32.mrb[0].mxu0
        %2041 = vmatprep.mubr.f32.mxu0 0.0
        %2042 = vmatmul.mubr.f32.gmra.mrb[0].mxu0 %v1882
        %v2043 = vpop.f32.mrb[0].mxu0
        %v2044 = vadd.f32 %v1925, %v2043
        %v2045 = vpop.f32.mrb[0].mxu0
        %2046 = vmatprep.mubr.f32.mxu0 0.0
        %2047 = vmatmul.mubr.f32.gmra.mrb[0].mxu0 %v1883
        %v2048 = vpop.f32.mrb[0].mxu0
        %v2049 = vadd.f32 %v1925, %v2048
        %v2050 = vpop.f32.mrb[0].mxu0
        %2051 = vmatprep.mubr.f32.mxu0 0.0
        %2052 = vmatmul.mubr.f32.gmra.mrb[0].mxu0 %v1884
        %v2053 = vpop.f32.mrb[0].mxu0
        %v2054 = vadd.f32 %v1925, %v2053
        %v2055 = vpop.f32.mrb[0].mxu0
        %2056 = vmatprep.mubr.f32.mxu0 0.0
        %2057 = vmatmul.mubr.f32.gmra.mrb[0].mxu0 %v1885
        %v2058 = vpop.f32.mrb[0].mxu0
        %v2059 = vadd.f32 %v1925, %v2058
        %v2060 = vpop.f32.mrb[0].mxu0
        %2061 = vmatprep.mubr.f32.mxu0 0.0
        %2062 = vmatmul.mubr.f32.gmra.mrb[0].mxu0 %v1886
        %v2063 = vpop.f32.mrb[0].mxu0
        %v2064 = vadd.f32 %v1925, %v2063
        %v2065 = vpop.f32.mrb[0].mxu0
        %2066 = vmatprep.mubr.f32.mxu0 0.0
        %2067 = vmatmul.mubr.f32.gmra.mrb[0].mxu0 %v1887
        %v2068 = vpop.f32.mrb[0].mxu0
        %v2069 = vadd.f32 %v1925, %v2068
        %v2070 = vpop.f32.mrb[0].mxu0
        %2071 = vmatprep.mubr.f32.mxu0 0.0
        %2072 = vmatmul.mubr.f32.gmra.mrb[0].mxu0 %v1888
        %v2073 = vpop.f32.mrb[0].mxu0
        %v2074 = vadd.f32 %v1925, %v2073
        %v2075 = vpop.f32.mrb[0].mxu0
        %2076 = vmatprep.mubr.f32.mxu0 0.0
        %2077 = vmatmul.mubr.f32.gmra.mrb[0].mxu0 %v1889
        %v2078 = vpop.f32.mrb[0].mxu0
        %v2079 = vadd.f32 %v1925, %v2078
        %v2080 = vpop.f32.mrb[0].mxu0
        %2081 = vmatprep.mubr.f32.mxu0 0.0
        %2082 = vmatmul.mubr.f32.gmra.mrb[0].mxu0 %v1890
        %v2083 = vpop.f32.mrb[0].mxu0
        %v2084 = vadd.f32 %v1925, %v2083
        %v2085 = vpop.f32.mrb[0].mxu0
        %2086 = vmatprep.mubr.f32.mxu0 0.0
        %2087 = vmatmul.mubr.f32.gmra.mrb[0].mxu0 %v1891
        %v2088 = vpop.f32.mrb[0].mxu0
        %v2089 = vadd.f32 %v1925, %v2088
        %v2090 = vpop.f32.mrb[0].mxu0
        %2091 = vmatprep.mubr.f32.mxu0 0.0
        %2092 = vmatmul.mubr.f32.gmra.mrb[0].mxu0 %v1892
        %v2093 = vpop.f32.mrb[0].mxu0
        %v2094 = vadd.f32 %v1925, %v2093
        %v2095 = vpop.f32.mrb[0].mxu0
        %2096 = vmatprep.mubr.f32.mxu0 0.0
        %2097 = vmatmul.mubr.f32.gmra.mrb[0].mxu0 %v1893
        %v2098 = vpop.f32.mrb[0].mxu0
        %v2099 = vadd.f32 %v1925, %v2098
        %v2100 = vpop.f32.mrb[0].mxu0
        %2101 = vmatprep.mubr.f32.mxu0 0.0
        %2102 = vmatmul.mubr.f32.gmra.mrb[0].mxu0 %v1894
        %v2103 = vpop.f32.mrb[0].mxu0
        %v2104 = vadd.f32 %v1925, %v2103
        %v2105 = vpop.f32.mrb[0].mxu0
        %2106 = vmatprep.mubr.f32.mxu0 0.0
        %2107 = vmatmul.mubr.f32.gmra.mrb[0].mxu0 %v1895
        %v2108 = vpop.f32.mrb[0].mxu0
        %v2109 = vadd.f32 %v1925, %v2108
        %v2110 = vpop.f32.mrb[0].mxu0
        %2111 = vmatprep.mubr.f32.mxu0 0.0
        %2112 = vmatmul.mubr.f32.gmra.mrb[0].mxu0 %v1896
        %v2113 = vpop.f32.mrb[0].mxu0
        %v2114 = vadd.f32 %v1925, %v2113
        %v2115 = vpop.f32.mrb[0].mxu0
        %2116 = vmatprep.mubr.f32.mxu0 0.0
        %2117 = vmatmul.mubr.f32.gmra.mrb[0].mxu0 %v1897
        %v2118 = vpop.f32.mrb[0].mxu0
        %v2119 = vadd.f32 %v1925, %v2118
        %v2120 = vpop.f32.mrb[0].mxu0
        %2121 = vmatprep.mubr.f32.mxu0 0.0
        %2122 = vmatmul.mubr.f32.gmra.mrb[0].mxu0 %v1898
        %v2123 = vpop.f32.mrb[0].mxu0
        %v2124 = vadd.f32 %v1925, %v2123
        %v2125 = vpop.f32.mrb[0].mxu0
        %2126 = vmatprep.mubr.f32.mxu0 0.0
        %2127 = vmatmul.mubr.f32.gmra.mrb[0].mxu0 %v1899
        %v2128 = vpop.f32.mrb[0].mxu0
        %v2129 = vadd.f32 %v1925, %v2128
        %v2130 = vpop.f32.mrb[0].mxu0
        %2131 = vmatprep.mubr.f32.mxu0 0.0
        %2132 = vmatmul.mubr.f32.gmra.mrb[0].mxu0 %v1900
        %v2133 = vpop.f32.mrb[0].mxu0
        %v2134 = vadd.f32 %v1925, %v2133
        %v2135 = vpop.f32.mrb[0].mxu0
        %2136 = vmatprep.mubr.f32.mxu0 0.0
        %2137 = vmatmul.mubr.f32.gmra.mrb[0].mxu0 %v1901
        %v2138 = vpop.f32.mrb[0].mxu0
        %v2139 = vadd.f32 %v1925, %v2138
        %v2140 = vpop.f32.mrb[0].mxu0
        %2141 = vmatprep.mubr.f32.mxu0 0.0
        %2142 = vmatmul.mubr.f32.gmra.mrb[0].mxu0 %v1902
        %v2143 = vpop.f32.mrb[0].mxu0
        %v2144 = vadd.f32 %v1925, %v2143
        %v2145 = vpop.f32.mrb[0].mxu0
        %2146 = vmatprep.mubr.f32.mxu0 0.0
        %2147 = vmatmul.mubr.f32.gmra.mrb[0].mxu0 %v1903
        %v2148 = vpop.f32.mrb[0].mxu0
        %v2149 = vadd.f32 %v1925, %v2148
        %v2150 = vpop.f32.mrb[0].mxu0
        %2151 = vdwg.mxu0
        %2152 = vst [vmem:[%s177] sm:$0xff] %v1994
        %2153 = vst [vmem:[%s177 + $0x8] sm:$0xff] %v1999
        %2154 = vst [vmem:[%s177 + $0x10] sm:$0xff] %v2004
        %2155 = vst [vmem:[%s177 + $0x18] sm:$0xff] %v2009
        %2156 = vst [vmem:[%s177 + $0x20] sm:$0xff] %v2014
        %2157 = vst [vmem:[%s177 + $0x28] sm:$0xff] %v2019
        %2158 = vst [vmem:[%s177 + $0x30] sm:$0xff] %v2024
        %2159 = vst [vmem:[%s177 + $0x38] sm:$0xff] %v2029
        %2160 = vst [vmem:[%s177 + $0x40] sm:$0xff] %v2034
        %2161 = vst [vmem:[%s177 + $0x48] sm:$0xff] %v2039
        %2162 = vst [vmem:[%s177 + $0x50] sm:$0xff] %v2044
        %2163 = vst [vmem:[%s177 + $0x58] sm:$0xff] %v2049
        %2164 = vst [vmem:[%s177 + $0x60] sm:$0xff] %v2054
        %2165 = vst [vmem:[%s177 + $0x68] sm:$0xff] %v2059
        %2166 = vst [vmem:[%s177 + $0x70] sm:$0xff] %v2064
        %2167 = vst [vmem:[%s177 + $0x78] sm:$0xff] %v2069
        %2168 = vst [vmem:[%s177 + $0x80] sm:$0xff] %v2074
        %2169 = vst [vmem:[%s177 + $0x88] sm:$0xff] %v2079
        %2170 = vst [vmem:[%s177 + $0x90] sm:$0xff] %v2084
        %2171 = vst [vmem:[%s177 + $0x98] sm:$0xff] %v2089
        %2172 = vst [vmem:[%s177 + $0xa0] sm:$0xff] %v2094
        %2173 = vst [vmem:[%s177 + $0xa8] sm:$0xff] %v2099
        %2174 = vst [vmem:[%s177 + $0xb0] sm:$0xff] %v2104
        %2175 = vst [vmem:[%s177 + $0xb8] sm:$0xff] %v2109
        %2176 = vst [vmem:[%s177 + $0xc0] sm:$0xff] %v2114
        %2177 = vst [vmem:[%s177 + $0xc8] sm:$0xff] %v2119
        %2178 = vst [vmem:[%s177 + $0xd0] sm:$0xff] %v2124
        %2179 = vst [vmem:[%s177 + $0xd8] sm:$0xff] %v2129
        %2180 = vst [vmem:[%s177 + $0xe0] sm:$0xff] %v2134
        %2181 = vst [vmem:[%s177 + $0xe8] sm:$0xff] %v2139
        %2182 = vst [vmem:[%s177 + $0xf0] sm:$0xff] %v2144
        %2183 = vst [vmem:[%s177 + $0xf8] sm:$0xff] %v2149
        %s2184 = sand.u32 %s107, 1
        %s2185 = scalar_lea.sflag [#allocation4], %s2184
        %s2186 = sand.u32 %s107, 1
        %s2187 = smul.addr %s2186, 256
        %s2188 = scalar_lea.vmem [#allocation3], %s2187
        // Predicated region
        $region33: #{tpu_custom_call.1} parent=31 // pred_check
          %p2189 = pneg %p117
        $region34: #{tpu_custom_call.1} parent=31 // pred_check_branch
          %2191 = sbr.rel (%p2189) target = $region36
        $region35: #{tpu_custom_call.1} parent=31 // pred_region
          %s2192 = smul.u32 16, %s22
          %s2194 = ssub.s32 4096, 4096
          %2195 = vsyncadd %s2185, %s2194
          %s2196 = smul.addr %s2192, 2
          %s2197 = smul.addr %s21, 32
          %s2198 = sadd.s32 %s2196, %s2197
          %s2199 = smul.addr %s2198, 128
          %s2200 = scalar_lea.hbm %s3, %s2199
          %s2201 = sshll.u32 %s2188, 4
          %s2202 = int_to_ptr.vmem [resolvable:$true] %s2201
          %2207 = dma.vmem_to_hbm [thread:$0]  %s2202, 4096, %s2200, %s2185, 128, 128, 8
        $region36: #{tpu_custom_call.1} parent=31 // pred_fallthru
          _
      $region32: #{tpu_custom_call.1} parent=5 // pred_fallthru
        _
      %p2208 = scmp.le.s32.totalorder 2, %s12
      // Predicated region
      $region37: #{tpu_custom_call.1} parent=5 // pred_check
        %p2209 = pneg %p2208
      $region38: #{tpu_custom_call.1} parent=5 // pred_check_branch
        %2211 = sbr.rel (%p2209) target = $region40
      $region39: #{tpu_custom_call.1} parent=5 // pred_region
        %s2212 = ssub.s32 %s12, 2
        // Predicated region
        $region41: #{tpu_custom_call.1} parent=39 // pred_check
          %p2213 = pneg %p123
        $region42: #{tpu_custom_call.1} parent=39 // pred_check_branch
          %2215 = sbr.rel (%p2213) target = $region44
        $region43: #{tpu_custom_call.1} parent=39 // pred_region
          %s2216 = sand.u32 %s108, 1
          %s2217 = scalar_lea.sflag [#allocation4], %s2216
          %s2218 = sand.u32 %s108, 1
          %s2219 = smul.addr %s2218, 256
          %s2220 = scalar_lea.vmem [#allocation3], %s2219
          %2221 = dma.done %s2217, 4096
        $region44: #{tpu_custom_call.1} parent=39 // pred_fallthru
          _
      $region40: #{tpu_custom_call.1} parent=5 // pred_fallthru
        _
    $region6: #{tpu_custom_call.1} parent=1 // loop_footer
      %s16 = sadd.s32 1, %s12
    $region7: #{tpu_custom_call.1} parent=1 // loop_footer_branch
      %11 = sbr.rel target = $region3
    $region8: #{tpu_custom_call.1} parent=1 // loop_exit
      _
    %2222 = vsyncpa [#allocation4], 1
    %s2223 = scalar_lea.sflag [#allocation4], 1
    %2224 = vsyncpa %s2223, 1

</llo_original>
